<compile_context>
chip_gen: v5e
topology: v5e:2x2
jax: 0.10.0
libtpu: 0.0.40
codegen_flags: <defaults>
</compile_context>

<pallas_src>
import functools
import math

import jax
import jax.numpy as jnp
from jax.experimental import pallas as pl
from jax.experimental.pallas import tpu as pltpu

BN_EPS = 1e-5
_SMALL_K = 8   # unrolled VPU FMA only when contraction dim K <= 8 ...
_SMALL_M = 8   # ... AND output rows M <= 8; otherwise use the MXU.


def _round_up(x, m):
    return (x + m - 1) // m * m


def _pick_tile(c, s):
    """Lane tile ts and padded extent s_pad for a (c, s) channel-major slab.

    Prefer a 128-multiple tile that divides s exactly (no wrapper pad/slice
    copies).  Target ~2 MiB f32 per input block: >=512-lane tiles already sit
    at ~85% of HBM roofline and 2 MiB blocks stay comfortable on v7x VMEM."""
    target = max(512, (2 << 20) // (4 * max(c, 1)))
    target = max(128, (target // 128) * 128)
    if s % 128 == 0 and s <= target:
        return s, s                              # single tile, no pad
    if s % 128 == 0:
        for ts in range(target, 511, -128):      # decent-sized exact divisor
            if s % ts == 0:
                return ts, s
    ts = min(target, _round_up(s, 128))          # fall back: pad to tile mult.
    return ts, _round_up(s, ts)


def _vmem_limit(*block_shapes):
    """VMEM budget from actual (double-buffered, f32) block sizes + headroom."""
    need = sum(2 * 4 * math.prod(s) for s in block_shapes) + (4 << 20)
    return int(min(max(need, 16 << 20), 64 << 20))


def _channel_mix(w, x, b):
    """(m, k) @ (k, s) + (m, 1): channels on sublanes, spatial/batch on lanes.

    Unrolled VPU FMA only when both K and M are tiny (cost ~ K*M VALU work per
    lane); otherwise jnp.dot on the MXU so the kernel stays DMA-bound."""
    m, k = w.shape
    if k <= _SMALL_K and m <= _SMALL_M:
        acc = b + w[:, 0:1] * x[0:1, :]
        for c in range(1, k):
            acc = acc + w[:, c:c + 1] * x[c:c + 1, :]
        return acc
    return jnp.dot(w, x, preferred_element_type=jnp.float32) + b


def _reduce_samples(a):
    """(n, c, 1) -> (c, 1): unrolled add over the tiny leading sample axis."""
    s = a[0]
    for i in range(1, a.shape[0]):
        s = s + a[i]
    return s


def _bn_scale_shift(sum_ref, sq_ref, gamma_ref, beta_ref, inv_count):
    """Fold batch statistics + BN affine into per-channel scale/shift."""
    mean = _reduce_samples(sum_ref[...]) * inv_count
    # TODO(synk): E[h^2]-E[h]^2 is cancellation-prone if |mean| >> std of the
    # conv1 activations; a Welford/centered accumulation would be more robust.
    var = jnp.maximum(_reduce_samples(sq_ref[...]) * inv_count - mean * mean, 0.0)
    scale = gamma_ref[...] * jax.lax.rsqrt(var + BN_EPS)
    shift = beta_ref[...] - mean * scale
    return scale, shift


# ---------------------------------------------------------------------------
# Kernels
# ---------------------------------------------------------------------------
def _conv1_tile(x_ref, w1_ref, b1_ref, hw, ts, t):
    h = _channel_mix(w1_ref[...], x_ref[0], b1_ref[...])         # (c_mid, ts)
    if hw % ts != 0:                         # mask pad lanes (padded case only)
        col = t * ts + jax.lax.broadcasted_iota(jnp.int32, (1, ts), 1)
        hm = jnp.where(col < hw, h, 0.0)
    else:
        hm = h
    return h, hm


def _stats_kernel(x_ref, w1_ref, b1_ref, sum_ref, sq_ref, *, hw, ts):
    """Pass 1 (no stash): conv1; accumulate per-sample sum / sum-of-squares."""
    t = pl.program_id(1)

    @pl.when(t == 0)
    def _():
        sum_ref[...] = jnp.zeros_like(sum_ref)
        sq_ref[...] = jnp.zeros_like(sq_ref)

    _, hm = _conv1_tile(x_ref, w1_ref, b1_ref, hw, ts, t)
    sum_ref[0] += jnp.sum(hm, axis=1, keepdims=True)
    sq_ref[0] += jnp.sum(hm * hm, axis=1, keepdims=True)


def _stats_stash_kernel(x_ref, w1_ref, b1_ref, h_ref, sum_ref, sq_ref, *, hw, ts):
    """Pass 1 (stash): same, but also write the conv1 intermediate h to HBM."""
    t = pl.program_id(1)

    @pl.when(t == 0)
    def _():
        sum_ref[...] = jnp.zeros_like(sum_ref)
        sq_ref[...] = jnp.zeros_like(sq_ref)

    h, hm = _conv1_tile(x_ref, w1_ref, b1_ref, hw, ts, t)
    h_ref[0] = h
    sum_ref[0] += jnp.sum(hm, axis=1, keepdims=True)
    sq_ref[0] += jnp.sum(hm * hm, axis=1, keepdims=True)


def _apply_from_h_kernel(h_ref, sum_ref, sq_ref, gamma_ref, beta_ref,
                         w2_ref, b2_ref, o_ref, *, inv_count):
    """Pass 2 (stash): BN scale/shift (computed in-kernel) -> ReLU -> conv2 -> tanh."""
    scale, shift = _bn_scale_shift(sum_ref, sq_ref, gamma_ref, beta_ref, inv_count)
    hn = jnp.maximum(h_ref[0] * scale + shift, 0.0)
    o_ref[0] = jnp.tanh(_channel_mix(w2_ref[...], hn, b2_ref[...]))


def _apply_from_x_kernel(x_ref, w1_ref, b1_ref, sum_ref, sq_ref, gamma_ref,
                         beta_ref, w2_ref, b2_ref, o_ref, *, inv_count):
    """Pass 2 (recompute): conv1 with BN folded in -> ReLU -> conv2 -> tanh."""
    scale, shift = _bn_scale_shift(sum_ref, sq_ref, gamma_ref, beta_ref, inv_count)
    w1_eff = w1_ref[...] * scale
    b1_eff = b1_ref[...] * scale + shift
    h = jnp.maximum(_channel_mix(w1_eff, x_ref[0], b1_eff), 0.0)
    o_ref[0] = jnp.tanh(_channel_mix(w2_ref[...], h, b2_ref[...]))


def _fc_kernel(x_ref, w1_ref, b1_ref, w2_ref, b2_ref, o_ref):
    """fc1 -> ReLU -> fc2 -> tanh on a (batch_tile, c_in) block.

    Weights stay in torch layout; contractions use dot_general so no HBM (or
    VMEM) transposes are needed."""
    x = x_ref[...]
    h = jax.lax.dot_general(x, w1_ref[...], (((1,), (1,)), ((), ())),
                            preferred_element_type=jnp.float32) + b1_ref[...]
    h = jnp.maximum(h, 0.0)
    o = jax.lax.dot_general(h, w2_ref[...], (((1,), (1,)), ((), ())),
                            preferred_element_type=jnp.float32) + b2_ref[...]
    o_ref[...] = jnp.tanh(o)


# ---------------------------------------------------------------------------
# Wrappers
# ---------------------------------------------------------------------------
@jax.jit
def noisy_net_conv(x_nchw, w1, b1, gamma, beta, w2, b2):
    """x_nchw: (N, C_in, H, W) -> (N, C_in, H, W).  Params in kernel layout."""
    n, c_in, hgt, wid = x_nchw.shape
    c_mid = w1.shape[0]
    hw = hgt * wid

    ts, s_pad = _pick_tile(max(c_in, c_mid), hw)
    n_t = s_pad // ts
    inv_count = 1.0 / float(n * hw)
    # Stash conv1 output only when that reduces HBM traffic (c_mid < c_in/2):
    # stash ~ 2*c_in + 2*c_mid  vs  recompute ~ 3*c_in  (in HW*4B units).
    stash_h = 2 * c_mid < c_in

    x3 = x_nchw.reshape(n, c_in, hw).astype(jnp.float32)
    if s_pad != hw:
        x3 = jnp.pad(x3, ((0, 0), (0, 0), (0, s_pad - hw)))

    x_spec = pl.BlockSpec((1, c_in, ts), lambda ni, ti: (ni, 0, ti))
    h_spec = pl.BlockSpec((1, c_mid, ts), lambda ni, ti: (ni, 0, ti))
    stat_spec = pl.BlockSpec((1, c_mid, 1), lambda ni, ti: (ni, 0, 0))

    def full(shape):  # tiny resident operand, constant block index
        return pl.BlockSpec(shape, lambda ni, ti: (0,) * len(shape))

    stat_shape = jax.ShapeDtypeStruct((n, c_mid, 1), jnp.float32)

    # ---- pass 1: conv1 (+ optional h stash) and per-sample BN partial stats.
    # Sample axis "parallel" (megacore on v7x); the spatial-tile axis carries
    # the resident per-sample accumulators -> "arbitrary".
    if stash_h:
        kernel1 = functools.partial(_stats_stash_kernel, hw=hw, ts=ts)
        out_shape1 = (jax.ShapeDtypeStruct((n, c_mid, s_pad), jnp.float32),
                      stat_shape, stat_shape)
        out_specs1 = (h_spec, stat_spec, stat_spec)
    else:
        kernel1 = functools.partial(_stats_kernel, hw=hw, ts=ts)
        out_shape1 = (stat_shape, stat_shape)
        out_specs1 = (stat_spec, stat_spec)

    res1 = pl.pallas_call(
        kernel1,
        out_shape=out_shape1,
        grid=(n, n_t),
        in_specs=[x_spec, full((c_mid, c_in)), full((c_mid, 1))],
        out_specs=out_specs1,
        compiler_params=pltpu.CompilerParams(
            dimension_semantics=("parallel", "arbitrary"),
            vmem_limit_bytes=_vmem_limit(
                (1, c_in, ts), (c_mid, c_in), (c_mid, 1),
                (1, c_mid, ts), (1, c_mid, 1), (1, c_mid, 1))),
    )(x3, w1, b1)
    if stash_h:
        h3, ch_sum, ch_sq = res1
    else:
        ch_sum, ch_sq = res1

    # ---- pass 2: BN fold computed in-kernel from the raw partial sums (no
    # tiny inter-call XLA ops); grid fully "parallel".
    out_shape2 = jax.ShapeDtypeStruct((n, c_in, s_pad), jnp.float32)
    stat_full = full((n, c_mid, 1))

    if stash_h:
        out3 = pl.pallas_call(
            functools.partial(_apply_from_h_kernel, inv_count=inv_count),
            out_shape=out_shape2,
            grid=(n, n_t),
            in_specs=[h_spec, stat_full, stat_full, full((c_mid, 1)),
                      full((c_mid, 1)), full((c_in, c_mid)), full((c_in, 1))],
            out_specs=x_spec,
            compiler_params=pltpu.CompilerParams(
                dimension_semantics=("parallel", "parallel"),
                vmem_limit_bytes=_vmem_limit(
                    (1, c_mid, ts), (n, c_mid, 1), (n, c_mid, 1),
                    (c_mid, 1), (c_mid, 1), (c_in, c_mid), (c_in, 1),
                    (1, c_in, ts))),
        )(h3, ch_sum, ch_sq, gamma, beta, w2, b2)
    else:
        out3 = pl.pallas_call(
            functools.partial(_apply_from_x_kernel, inv_count=inv_count),
            out_shape=out_shape2,
            grid=(n, n_t),
            in_specs=[x_spec, full((c_mid, c_in)), full((c_mid, 1)),
                      stat_full, stat_full, full((c_mid, 1)),
                      full((c_mid, 1)), full((c_in, c_mid)), full((c_in, 1))],
            out_specs=x_spec,
            compiler_params=pltpu.CompilerParams(
                dimension_semantics=("parallel", "parallel"),
                vmem_limit_bytes=_vmem_limit(
                    (1, c_in, ts), (c_mid, c_in), (c_mid, 1),
                    (n, c_mid, 1), (n, c_mid, 1), (c_mid, 1), (c_mid, 1),
                    (c_in, c_mid), (c_in, 1), (1, c_in, ts))),
        )(x3, w1, b1, ch_sum, ch_sq, gamma, beta, w2, b2)

    if s_pad != hw:
        out3 = out3[:, :, :hw]
    return out3.reshape(n, c_in, hgt, wid)


@jax.jit
def noisy_net_fc(x, w1, b1, w2, b2):
    """x: (B, C_in) -> (B, C_in).  Params in kernel layout (no transposes)."""
    b, c_in = x.shape
    c_mid = w1.shape[0]

    tb_target = max(8, ((2 << 20) // (4 * max(c_in, 1)) // 8) * 8)
    tb = min(_round_up(b, 8), tb_target)        # multiple of 8 (sublane dim)
    b_pad = _round_up(b, tb)
    n_t = b_pad // tb

    x2 = x.astype(jnp.float32)
    if b_pad != b:
        x2 = jnp.pad(x2, ((0, b_pad - b), (0, 0)))

    x_spec = pl.BlockSpec((tb, c_in), lambda ti: (ti, 0))

    def full(shape):
        return pl.BlockSpec(shape, lambda ti: (0,) * len(shape))

    out = pl.pallas_call(
        _fc_kernel,
        out_shape=jax.ShapeDtypeStruct((b_pad, c_in), jnp.float32),
        grid=(n_t,),
        in_specs=[x_spec, full((c_mid, c_in)), full((1, c_mid)),
                  full((c_in, c_mid)), full((1, c_in))],
        out_specs=x_spec,
        compiler_params=pltpu.CompilerParams(
            dimension_semantics=("parallel",),
            vmem_limit_bytes=_vmem_limit(
                (tb, c_in), (c_mid, c_in), (1, c_mid),
                (c_in, c_mid), (1, c_in), (tb, c_in))),
    )(x2, w1, b1, w2, b2)

    return out if b_pad == b else out[:b]


# ---------------------------------------------------------------------------
# Deterministic parameter init (mirrors NoisyNet._initialize_weights) + prep
# ---------------------------------------------------------------------------
def init_conv_params(key, c_in):
    c_mid = max(c_in // 4, 4)
    k1, k2 = jax.random.split(key)
    w1 = jax.random.normal(k1, (c_mid, c_in), jnp.float32) * jnp.sqrt(2.0 / c_mid)
    b1 = jnp.zeros((c_mid,), jnp.float32)
    gamma = jnp.full((c_mid,), 0.5, jnp.float32)   # BatchNorm weight
    beta = jnp.zeros((c_mid,), jnp.float32)        # BatchNorm bias
    w2 = jax.random.normal(k2, (c_in, c_mid), jnp.float32) * jnp.sqrt(2.0 / c_in)
    b2 = jnp.zeros((c_in,), jnp.float32)
    return w1, b1, gamma, beta, w2, b2


def prepare_conv_params(w1, b1, gamma, beta, w2, b2):
    """One-time layout/dtype prep (hoisted out of the per-call wrapper)."""
    f = lambda a: jnp.asarray(a, jnp.float32)
    col = lambda a: jnp.asarray(a, jnp.float32).reshape(-1, 1)
    return f(w1), col(b1), col(gamma), col(beta), f(w2), col(b2)


def init_fc_params(key, c_in):
    c_mid = max(c_in // 4, 4)
    k1, k2 = jax.random.split(key)
    w1 = jax.random.normal(k1, (c_mid, c_in), jnp.float32) * 0.01
    b1 = jnp.zeros((c_mid,), jnp.float32)
    w2 = jax.random.normal(k2, (c_in, c_mid), jnp.float32) * 0.01
    b2 = jnp.zeros((c_in,), jnp.float32)
    return w1, b1, w2, b2


def prepare_fc_params(w1, b1, w2, b2):
    f = lambda a: jnp.asarray(a, jnp.float32)
    row = lambda a: jnp.asarray(a, jnp.float32).reshape(1, -1)
    return f(w1), row(b1), f(w2), row(b2)


# ---------------------------------------------------------------------------
# Plain-JAX references for verification
# ---------------------------------------------------------------------------
def ref_conv(x_nchw, w1, b1, gamma, beta, w2, b2):
    n, c_in, hgt, wid = x_nchw.shape
    x2d = jnp.transpose(x_nchw, (0, 2, 3, 1)).reshape(-1, c_in)
    h = x2d @ w1.T + b1
    mean = jnp.mean(h, axis=0, keepdims=True)
    var = jnp.mean((h - mean) ** 2, axis=0, keepdims=True)
    h = (h - mean) * gamma * jax.lax.rsqrt(var + BN_EPS) + beta
    h = jnp.maximum(h, 0.0)
    y = jnp.tanh(h @ w2.T + b2)
    return jnp.transpose(y.reshape(n, hgt, wid, c_in), (0, 3, 1, 2))


def ref_fc(x, w1, b1, w2, b2):
    h = jnp.maximum(x @ w1.T + b1, 0.0)
    return jnp.tanh(h @ w2.T + b2)


# ---------------------------------------------------------------------------
if __name__ == "__main__":
    key = jax.random.PRNGKey(0)
    kx1, kp1, kx2, kp2, kxf, kpf = jax.random.split(key, 6)

    # Conv path A: c_in=4 -> c_mid=4 (recompute-conv1 pass-2 variant, no pad).
    x1 = jax.random.normal(kx1, (2, 4, 16, 16), dtype=jnp.float32)
    raw1 = init_conv_params(kp1, c_in=4)
    out1 = noisy_net_conv(x1, *prepare_conv_params(*raw1))
    jax.block_until_ready(out1)
    ref1 = ref_conv(x1, *raw1)
    assert out1.shape == x1.shape
    assert jnp.allclose(out1, ref1, atol=1e-4, rtol=1e-4), float(
        jnp.max(jnp.abs(out1 - ref1)))

    # Conv path B: c_in=16 -> c_mid=4 (stash-h pass-2 variant, padded lanes).
    x2 = jax.random.normal(kx2, (2, 16, 8, 8), dtype=jnp.float32)
    raw2 = init_conv_params(kp2, c_in=16)
    out2 = noisy_net_conv(x2, *prepare_conv_params(*raw2))
    jax.block_until_ready(out2)
    ref2 = ref_conv(x2, *raw2)
    assert out2.shape == x2.shape
    assert jnp.allclose(out2, ref2, atol=1e-4, rtol=1e-4), float(
        jnp.max(jnp.abs(out2 - ref2)))

    # FC path: x (B, C_in) = (8, 32) -> c_mid = max(32//4, 4) = 8.
    xf = jax.random.normal(kxf, (8, 32), dtype=jnp.float32)
    rawf = init_fc_params(kpf, c_in=32)
    outf = noisy_net_fc(xf, *prepare_fc_params(*rawf))
    jax.block_until_ready(outf)
    reff = ref_fc(xf, *rawf)
    assert outf.shape == xf.shape
    assert jnp.allclose(outf, reff, atol=1e-4, rtol=1e-4), float(
        jnp.max(jnp.abs(outf - reff)))

    # TODO(synk): BatchNorm running_mean/running_var buffer updates (a torch
    # training-mode side effect) are not modeled; the forward output does not
    # depend on them.
    print("KERNEL_OK")
</pallas_src>

<mosaic_0001>
module attributes {stable_mosaic.version = 11 : i64} {
  func.func @_stats_kernel(%arg0: i32, %arg1: i32, %arg2: memref<1x4x256xf32, #tpu.memory_space<vmem>>, %arg3: memref<4x4xf32, #tpu.memory_space<vmem>>, %arg4: memref<4x1xf32, #tpu.memory_space<vmem>>, %arg5: memref<1x4x1xf32, #tpu.memory_space<vmem>>, %arg6: memref<1x4x1xf32, #tpu.memory_space<vmem>>) attributes {dimension_semantics = [#tpu.dimension_semantics<parallel>, #tpu.dimension_semantics<arbitrary>], iteration_bounds = array<i64: 2, 1>, scalar_prefetch = 0 : i64, scratch_operands = 0 : i64, tpu.core_type = #tpu.core_type<tc>, window_params = [{transform_indices = @transform_0, window_bounds = array<i64: 1, 4, 256>}, {pipeline_mode = #tpu.pipeline_mode<synchronous>, transform_indices = @transform_1, window_bounds = array<i64: 4, 4>}, {pipeline_mode = #tpu.pipeline_mode<synchronous>, transform_indices = @transform_2, window_bounds = array<i64: 4, 1>}, {transform_indices = @transform_3, window_bounds = array<i64: 1, 4, 1>}, {transform_indices = @transform_4, window_bounds = array<i64: 1, 4, 1>}]} {
    %c0_i32 = arith.constant 0 : i32
    %0 = arith.cmpi eq, %arg1, %c0_i32 : i32
    %1 = arith.extui %0 : i1 to i32
    %c0_i32_0 = arith.constant 0 : i32
    %2 = arith.cmpi ne, %1, %c0_i32_0 : i32
    scf.if %2 {
      %cst_20 = arith.constant 0.000000e+00 : f32
      %49 = vector.broadcast %cst_20 : f32 to vector<1x4x1xf32>
      %c0_21 = arith.constant 0 : index
      %c0_22 = arith.constant 0 : index
      %c0_23 = arith.constant 0 : index
      %50 = vector.load %arg5[%c0_21, %c0_22, %c0_23] : memref<1x4x1xf32, #tpu.memory_space<vmem>>, vector<1x4x1xf32>
      tpu.vector_store %arg5[%c0_21, %c0_22, %c0_23], %49 {strides = array<i32>} : memref<1x4x1xf32, #tpu.memory_space<vmem>>, vector<1x4x1xf32>,
      %cst_24 = arith.constant 0.000000e+00 : f32
      %51 = vector.broadcast %cst_24 : f32 to vector<1x4x1xf32>
      %c0_25 = arith.constant 0 : index
      %c0_26 = arith.constant 0 : index
      %c0_27 = arith.constant 0 : index
      %52 = vector.load %arg6[%c0_25, %c0_26, %c0_27] : memref<1x4x1xf32, #tpu.memory_space<vmem>>, vector<1x4x1xf32>
      tpu.vector_store %arg6[%c0_25, %c0_26, %c0_27], %51 {strides = array<i32>} : memref<1x4x1xf32, #tpu.memory_space<vmem>>, vector<1x4x1xf32>,
    } else {
    }
    %c0 = arith.constant 0 : index
    %c0_1 = arith.constant 0 : index
    %3 = vector.load %arg3[%c0, %c0_1] : memref<4x4xf32, #tpu.memory_space<vmem>>, vector<4x4xf32>
    %c0_2 = arith.constant 0 : index
    %c0_3 = arith.constant 0 : index
    %c0_4 = arith.constant 0 : index
    %4 = vector.load %arg2[%c0_2, %c0_3, %c0_4] : memref<1x4x256xf32, #tpu.memory_space<vmem>>, vector<1x4x256xf32>
    %5 = vector.shape_cast %4 : vector<1x4x256xf32> to vector<4x256xf32>
    %c0_5 = arith.constant 0 : index
    %c0_6 = arith.constant 0 : index
    %6 = vector.load %arg4[%c0_5, %c0_6] : memref<4x1xf32, #tpu.memory_space<vmem>>, vector<4x1xf32>
    %7 = vector.extract_strided_slice %3 {offsets = [0, 0], sizes = [4, 1], strides = [1, 1]} : vector<4x4xf32> to vector<4x1xf32>
    %8 = vector.extract_strided_slice %5 {offsets = [0, 0], sizes = [1, 256], strides = [1, 1]} : vector<4x256xf32> to vector<1x256xf32>
    %9 = vector.broadcast %7 : vector<4x1xf32> to vector<4x256xf32>
    %10 = vector.broadcast %8 : vector<1x256xf32> to vector<4x256xf32>
    %11 = arith.mulf %9, %10 : vector<4x256xf32>
    %12 = vector.broadcast %6 : vector<4x1xf32> to vector<4x256xf32>
    %13 = arith.addf %12, %11 : vector<4x256xf32>
    %14 = vector.extract_strided_slice %3 {offsets = [0, 1], sizes = [4, 1], strides = [1, 1]} : vector<4x4xf32> to vector<4x1xf32>
    %15 = vector.extract_strided_slice %5 {offsets = [1, 0], sizes = [1, 256], strides = [1, 1]} : vector<4x256xf32> to vector<1x256xf32>
    %16 = vector.broadcast %14 : vector<4x1xf32> to vector<4x256xf32>
    %17 = vector.broadcast %15 : vector<1x256xf32> to vector<4x256xf32>
    %18 = arith.mulf %16, %17 : vector<4x256xf32>
    %19 = arith.addf %13, %18 : vector<4x256xf32>
    %20 = vector.extract_strided_slice %3 {offsets = [0, 2], sizes = [4, 1], strides = [1, 1]} : vector<4x4xf32> to vector<4x1xf32>
    %21 = vector.extract_strided_slice %5 {offsets = [2, 0], sizes = [1, 256], strides = [1, 1]} : vector<4x256xf32> to vector<1x256xf32>
    %22 = vector.broadcast %20 : vector<4x1xf32> to vector<4x256xf32>
    %23 = vector.broadcast %21 : vector<1x256xf32> to vector<4x256xf32>
    %24 = arith.mulf %22, %23 : vector<4x256xf32>
    %25 = arith.addf %19, %24 : vector<4x256xf32>
    %26 = vector.extract_strided_slice %3 {offsets = [0, 3], sizes = [4, 1], strides = [1, 1]} : vector<4x4xf32> to vector<4x1xf32>
    %27 = vector.extract_strided_slice %5 {offsets = [3, 0], sizes = [1, 256], strides = [1, 1]} : vector<4x256xf32> to vector<1x256xf32>
    %28 = vector.broadcast %26 : vector<4x1xf32> to vector<4x256xf32>
    %29 = vector.broadcast %27 : vector<1x256xf32> to vector<4x256xf32>
    %30 = arith.mulf %28, %29 : vector<4x256xf32>
    %31 = arith.addf %25, %30 : vector<4x256xf32>
    %c0_7 = arith.constant 0 : index
    %c0_8 = arith.constant 0 : index
    %c0_9 = arith.constant 0 : index
    %32 = vector.load %arg5[%c0_7, %c0_8, %c0_9] : memref<1x4x1xf32, #tpu.memory_space<vmem>>, vector<1x4x1xf32>
    %33 = vector.shape_cast %32 : vector<1x4x1xf32> to vector<4x1xf32>
    %cst = arith.constant dense<0.000000e+00> : vector<4xf32>
    %34 = vector.multi_reduction <add>, %31, %cst [1] : vector<4x256xf32> to vector<4xf32>
    %35 = vector.shape_cast %34 : vector<4xf32> to vector<4x1xf32>
    %36 = arith.addf %33, %35 : vector<4x1xf32>
    %c0_10 = arith.constant 0 : index
    %c0_11 = arith.constant 0 : index
    %c0_12 = arith.constant 0 : index
    %37 = vector.load %arg5[%c0_10, %c0_11, %c0_12] : memref<1x4x1xf32, #tpu.memory_space<vmem>>, vector<1x4x1xf32>
    %38 = vector.shape_cast %37 : vector<1x4x1xf32> to vector<4x1xf32>
    %39 = vector.shape_cast %36 : vector<4x1xf32> to vector<1x4x1xf32>
    tpu.vector_store %arg5[%c0_10, %c0_11, %c0_12], %39 {strides = array<i32>} : memref<1x4x1xf32, #tpu.memory_space<vmem>>, vector<1x4x1xf32>,
    %c0_13 = arith.constant 0 : index
    %c0_14 = arith.constant 0 : index
    %c0_15 = arith.constant 0 : index
    %40 = vector.load %arg6[%c0_13, %c0_14, %c0_15] : memref<1x4x1xf32, #tpu.memory_space<vmem>>, vector<1x4x1xf32>
    %41 = vector.shape_cast %40 : vector<1x4x1xf32> to vector<4x1xf32>
    %42 = arith.mulf %31, %31 : vector<4x256xf32>
    %cst_16 = arith.constant dense<0.000000e+00> : vector<4xf32>
    %43 = vector.multi_reduction <add>, %42, %cst_16 [1] : vector<4x256xf32> to vector<4xf32>
    %44 = vector.shape_cast %43 : vector<4xf32> to vector<4x1xf32>
    %45 = arith.addf %41, %44 : vector<4x1xf32>
    %c0_17 = arith.constant 0 : index
    %c0_18 = arith.constant 0 : index
    %c0_19 = arith.constant 0 : index
    %46 = vector.load %arg6[%c0_17, %c0_18, %c0_19] : memref<1x4x1xf32, #tpu.memory_space<vmem>>, vector<1x4x1xf32>
    %47 = vector.shape_cast %46 : vector<1x4x1xf32> to vector<4x1xf32>
    %48 = vector.shape_cast %45 : vector<4x1xf32> to vector<1x4x1xf32>
    tpu.vector_store %arg6[%c0_17, %c0_18, %c0_19], %48 {strides = array<i32>} : memref<1x4x1xf32, #tpu.memory_space<vmem>>, vector<1x4x1xf32>,
    return
  }
  func.func @transform_0(%arg0: i32, %arg1: i32) -> (i32, i32, i32) {
    %c0_i32 = arith.constant 0 : i32
    %c0_i32_0 = arith.constant 0 : i32
    return %arg0, %c0_i32, %arg1 : i32, i32, i32
  }
  func.func @transform_1(%arg0: i32, %arg1: i32) -> (i32, i32) {
    %c0_i32 = arith.constant 0 : i32
    %c0_i32_0 = arith.constant 0 : i32
    %c0_i32_1 = arith.constant 0 : i32
    return %c0_i32, %c0_i32_0 : i32, i32
  }
  func.func @transform_2(%arg0: i32, %arg1: i32) -> (i32, i32) {
    %c0_i32 = arith.constant 0 : i32
    %c0_i32_0 = arith.constant 0 : i32
    %c0_i32_1 = arith.constant 0 : i32
    return %c0_i32, %c0_i32_0 : i32, i32
  }
  func.func @transform_3(%arg0: i32, %arg1: i32) -> (i32, i32, i32) {
    %c0_i32 = arith.constant 0 : i32
    %c0_i32_0 = arith.constant 0 : i32
    %c0_i32_1 = arith.constant 0 : i32
    return %arg0, %c0_i32, %c0_i32_0 : i32, i32, i32
  }
  func.func @transform_4(%arg0: i32, %arg1: i32) -> (i32, i32, i32) {
    %c0_i32 = arith.constant 0 : i32
    %c0_i32_0 = arith.constant 0 : i32
    %c0_i32_1 = arith.constant 0 : i32
    return %arg0, %c0_i32, %c0_i32_0 : i32, i32, i32
  }
}

module attributes {stable_mosaic.version = 11 : i64} {
  func.func @_apply_from_x_kernel(%arg0: i32, %arg1: i32, %arg2: memref<1x4x256xf32, #tpu.memory_space<vmem>>, %arg3: memref<4x4xf32, #tpu.memory_space<vmem>>, %arg4: memref<4x1xf32, #tpu.memory_space<vmem>>, %arg5: memref<2x4x1xf32, #tpu.memory_space<vmem>>, %arg6: memref<2x4x1xf32, #tpu.memory_space<vmem>>, %arg7: memref<4x1xf32, #tpu.memory_space<vmem>>, %arg8: memref<4x1xf32, #tpu.memory_space<vmem>>, %arg9: memref<4x4xf32, #tpu.memory_space<vmem>>, %arg10: memref<4x1xf32, #tpu.memory_space<vmem>>, %arg11: memref<1x4x256xf32, #tpu.memory_space<vmem>>) attributes {dimension_semantics = [#tpu.dimension_semantics<parallel>, #tpu.dimension_semantics<parallel>], iteration_bounds = array<i64: 2, 1>, scalar_prefetch = 0 : i64, scratch_operands = 0 : i64, tpu.core_type = #tpu.core_type<tc>, window_params = [{transform_indices = @transform_0, window_bounds = array<i64: 1, 4, 256>}, {pipeline_mode = #tpu.pipeline_mode<synchronous>, transform_indices = @transform_1, window_bounds = array<i64: 4, 4>}, {pipeline_mode = #tpu.pipeline_mode<synchronous>, transform_indices = @transform_2, window_bounds = array<i64: 4, 1>}, {pipeline_mode = #tpu.pipeline_mode<synchronous>, transform_indices = @transform_3, window_bounds = array<i64: 2, 4, 1>}, {pipeline_mode = #tpu.pipeline_mode<synchronous>, transform_indices = @transform_4, window_bounds = array<i64: 2, 4, 1>}, {pipeline_mode = #tpu.pipeline_mode<synchronous>, transform_indices = @transform_5, window_bounds = array<i64: 4, 1>}, {pipeline_mode = #tpu.pipeline_mode<synchronous>, transform_indices = @transform_6, window_bounds = array<i64: 4, 1>}, {pipeline_mode = #tpu.pipeline_mode<synchronous>, transform_indices = @transform_7, window_bounds = array<i64: 4, 4>}, {pipeline_mode = #tpu.pipeline_mode<synchronous>, transform_indices = @transform_8, window_bounds = array<i64: 4, 1>}, {transform_indices = @transform_9, window_bounds = array<i64: 1, 4, 256>}]} {
    %c0 = arith.constant 0 : index
    %c0_0 = arith.constant 0 : index
    %c0_1 = arith.constant 0 : index
    %0 = vector.load %arg5[%c0, %c0_0, %c0_1] : memref<2x4x1xf32, #tpu.memory_space<vmem>>, vector<2x4x1xf32>
    %1 = vector.extract_strided_slice %0 {offsets = [0, 0, 0], sizes = [1, 4, 1], strides = [1, 1, 1]} : vector<2x4x1xf32> to vector<1x4x1xf32>
    %2 = vector.shape_cast %1 : vector<1x4x1xf32> to vector<4x1xf32>
    %3 = vector.extract_strided_slice %0 {offsets = [1, 0, 0], sizes = [1, 4, 1], strides = [1, 1, 1]} : vector<2x4x1xf32> to vector<1x4x1xf32>
    %4 = vector.shape_cast %3 : vector<1x4x1xf32> to vector<4x1xf32>
    %5 = arith.addf %2, %4 : vector<4x1xf32>
    %cst = arith.constant 0.001953125 : f32
    %6 = vector.broadcast %cst : f32 to vector<4x1xf32>
    %7 = arith.mulf %5, %6 : vector<4x1xf32>
    %c0_2 = arith.constant 0 : index
    %c0_3 = arith.constant 0 : index
    %c0_4 = arith.constant 0 : index
    %8 = vector.load %arg6[%c0_2, %c0_3, %c0_4] : memref<2x4x1xf32, #tpu.memory_space<vmem>>, vector<2x4x1xf32>
    %9 = vector.extract_strided_slice %8 {offsets = [0, 0, 0], sizes = [1, 4, 1], strides = [1, 1, 1]} : vector<2x4x1xf32> to vector<1x4x1xf32>
    %10 = vector.shape_cast %9 : vector<1x4x1xf32> to vector<4x1xf32>
    %11 = vector.extract_strided_slice %8 {offsets = [1, 0, 0], sizes = [1, 4, 1], strides = [1, 1, 1]} : vector<2x4x1xf32> to vector<1x4x1xf32>
    %12 = vector.shape_cast %11 : vector<1x4x1xf32> to vector<4x1xf32>
    %13 = arith.addf %10, %12 : vector<4x1xf32>
    %cst_5 = arith.constant 0.001953125 : f32
    %14 = vector.broadcast %cst_5 : f32 to vector<4x1xf32>
    %15 = arith.mulf %13, %14 : vector<4x1xf32>
    %16 = arith.mulf %7, %7 : vector<4x1xf32>
    %17 = arith.subf %15, %16 : vector<4x1xf32>
    %cst_6 = arith.constant 0.000000e+00 : f32
    %18 = vector.broadcast %cst_6 : f32 to vector<4x1xf32>
    %19 = arith.maximumf %17, %18 : vector<4x1xf32>
    %c0_7 = arith.constant 0 : index
    %c0_8 = arith.constant 0 : index
    %20 = vector.load %arg7[%c0_7, %c0_8] : memref<4x1xf32, #tpu.memory_space<vmem>>, vector<4x1xf32>
    %cst_9 = arith.constant 9.99999974E-6 : f32
    %21 = vector.broadcast %cst_9 : f32 to vector<4x1xf32>
    %22 = arith.addf %19, %21 : vector<4x1xf32>
    %23 = math.rsqrt %22 : vector<4x1xf32>
    %24 = arith.mulf %20, %23 : vector<4x1xf32>
    %c0_10 = arith.constant 0 : index
    %c0_11 = arith.constant 0 : index
    %25 = vector.load %arg8[%c0_10, %c0_11] : memref<4x1xf32, #tpu.memory_space<vmem>>, vector<4x1xf32>
    %26 = arith.mulf %7, %24 : vector<4x1xf32>
    %27 = arith.subf %25, %26 : vector<4x1xf32>
    %c0_12 = arith.constant 0 : index
    %c0_13 = arith.constant 0 : index
    %28 = vector.load %arg3[%c0_12, %c0_13] : memref<4x4xf32, #tpu.memory_space<vmem>>, vector<4x4xf32>
    %29 = vector.broadcast %24 : vector<4x1xf32> to vector<4x4xf32>
    %30 = arith.mulf %28, %29 : vector<4x4xf32>
    %c0_14 = arith.constant 0 : index
    %c0_15 = arith.constant 0 : index
    %31 = vector.load %arg4[%c0_14, %c0_15] : memref<4x1xf32, #tpu.memory_space<vmem>>, vector<4x1xf32>
    %32 = arith.mulf %31, %24 : vector<4x1xf32>
    %33 = arith.addf %32, %27 : vector<4x1xf32>
    %c0_16 = arith.constant 0 : index
    %c0_17 = arith.constant 0 : index
    %c0_18 = arith.constant 0 : index
    %34 = vector.load %arg2[%c0_16, %c0_17, %c0_18] : memref<1x4x256xf32, #tpu.memory_space<vmem>>, vector<1x4x256xf32>
    %35 = vector.shape_cast %34 : vector<1x4x256xf32> to vector<4x256xf32>
    %36 = vector.extract_strided_slice %30 {offsets = [0, 0], sizes = [4, 1], strides = [1, 1]} : vector<4x4xf32> to vector<4x1xf32>
    %37 = vector.extract_strided_slice %35 {offsets = [0, 0], sizes = [1, 256], strides = [1, 1]} : vector<4x256xf32> to vector<1x256xf32>
    %38 = vector.broadcast %36 : vector<4x1xf32> to vector<4x256xf32>
    %39 = vector.broadcast %37 : vector<1x256xf32> to vector<4x256xf32>
    %40 = arith.mulf %38, %39 : vector<4x256xf32>
    %41 = vector.broadcast %33 : vector<4x1xf32> to vector<4x256xf32>
    %42 = arith.addf %41, %40 : vector<4x256xf32>
    %43 = vector.extract_strided_slice %30 {offsets = [0, 1], sizes = [4, 1], strides = [1, 1]} : vector<4x4xf32> to vector<4x1xf32>
    %44 = vector.extract_strided_slice %35 {offsets = [1, 0], sizes = [1, 256], strides = [1, 1]} : vector<4x256xf32> to vector<1x256xf32>
    %45 = vector.broadcast %43 : vector<4x1xf32> to vector<4x256xf32>
    %46 = vector.broadcast %44 : vector<1x256xf32> to vector<4x256xf32>
    %47 = arith.mulf %45, %46 : vector<4x256xf32>
    %48 = arith.addf %42, %47 : vector<4x256xf32>
    %49 = vector.extract_strided_slice %30 {offsets = [0, 2], sizes = [4, 1], strides = [1, 1]} : vector<4x4xf32> to vector<4x1xf32>
    %50 = vector.extract_strided_slice %35 {offsets = [2, 0], sizes = [1, 256], strides = [1, 1]} : vector<4x256xf32> to vector<1x256xf32>
    %51 = vector.broadcast %49 : vector<4x1xf32> to vector<4x256xf32>
    %52 = vector.broadcast %50 : vector<1x256xf32> to vector<4x256xf32>
    %53 = arith.mulf %51, %52 : vector<4x256xf32>
    %54 = arith.addf %48, %53 : vector<4x256xf32>
    %55 = vector.extract_strided_slice %30 {offsets = [0, 3], sizes = [4, 1], strides = [1, 1]} : vector<4x4xf32> to vector<4x1xf32>
    %56 = vector.extract_strided_slice %35 {offsets = [3, 0], sizes = [1, 256], strides = [1, 1]} : vector<4x256xf32> to vector<1x256xf32>
    %57 = vector.broadcast %55 : vector<4x1xf32> to vector<4x256xf32>
    %58 = vector.broadcast %56 : vector<1x256xf32> to vector<4x256xf32>
    %59 = arith.mulf %57, %58 : vector<4x256xf32>
    %60 = arith.addf %54, %59 : vector<4x256xf32>
    %cst_19 = arith.constant 0.000000e+00 : f32
    %61 = vector.broadcast %cst_19 : f32 to vector<4x256xf32>
    %62 = arith.maximumf %60, %61 : vector<4x256xf32>
    %c0_20 = arith.constant 0 : index
    %c0_21 = arith.constant 0 : index
    %63 = vector.load %arg9[%c0_20, %c0_21] : memref<4x4xf32, #tpu.memory_space<vmem>>, vector<4x4xf32>
    %c0_22 = arith.constant 0 : index
    %c0_23 = arith.constant 0 : index
    %64 = vector.load %arg10[%c0_22, %c0_23] : memref<4x1xf32, #tpu.memory_space<vmem>>, vector<4x1xf32>
    %65 = vector.extract_strided_slice %63 {offsets = [0, 0], sizes = [4, 1], strides = [1, 1]} : vector<4x4xf32> to vector<4x1xf32>
    %66 = vector.extract_strided_slice %62 {offsets = [0, 0], sizes = [1, 256], strides = [1, 1]} : vector<4x256xf32> to vector<1x256xf32>
    %67 = vector.broadcast %65 : vector<4x1xf32> to vector<4x256xf32>
    %68 = vector.broadcast %66 : vector<1x256xf32> to vector<4x256xf32>
    %69 = arith.mulf %67, %68 : vector<4x256xf32>
    %70 = vector.broadcast %64 : vector<4x1xf32> to vector<4x256xf32>
    %71 = arith.addf %70, %69 : vector<4x256xf32>
    %72 = vector.extract_strided_slice %63 {offsets = [0, 1], sizes = [4, 1], strides = [1, 1]} : vector<4x4xf32> to vector<4x1xf32>
    %73 = vector.extract_strided_slice %62 {offsets = [1, 0], sizes = [1, 256], strides = [1, 1]} : vector<4x256xf32> to vector<1x256xf32>
    %74 = vector.broadcast %72 : vector<4x1xf32> to vector<4x256xf32>
    %75 = vector.broadcast %73 : vector<1x256xf32> to vector<4x256xf32>
    %76 = arith.mulf %74, %75 : vector<4x256xf32>
    %77 = arith.addf %71, %76 : vector<4x256xf32>
    %78 = vector.extract_strided_slice %63 {offsets = [0, 2], sizes = [4, 1], strides = [1, 1]} : vector<4x4xf32> to vector<4x1xf32>
    %79 = vector.extract_strided_slice %62 {offsets = [2, 0], sizes = [1, 256], strides = [1, 1]} : vector<4x256xf32> to vector<1x256xf32>
    %80 = vector.broadcast %78 : vector<4x1xf32> to vector<4x256xf32>
    %81 = vector.broadcast %79 : vector<1x256xf32> to vector<4x256xf32>
    %82 = arith.mulf %80, %81 : vector<4x256xf32>
    %83 = arith.addf %77, %82 : vector<4x256xf32>
    %84 = vector.extract_strided_slice %63 {offsets = [0, 3], sizes = [4, 1], strides = [1, 1]} : vector<4x4xf32> to vector<4x1xf32>
    %85 = vector.extract_strided_slice %62 {offsets = [3, 0], sizes = [1, 256], strides = [1, 1]} : vector<4x256xf32> to vector<1x256xf32>
    %86 = vector.broadcast %84 : vector<4x1xf32> to vector<4x256xf32>
    %87 = vector.broadcast %85 : vector<1x256xf32> to vector<4x256xf32>
    %88 = arith.mulf %86, %87 : vector<4x256xf32>
    %89 = arith.addf %83, %88 : vector<4x256xf32>
    %90 = math.tanh %89 : vector<4x256xf32>
    %c0_24 = arith.constant 0 : index
    %c0_25 = arith.constant 0 : index
    %c0_26 = arith.constant 0 : index
    %91 = vector.load %arg11[%c0_24, %c0_25, %c0_26] : memref<1x4x256xf32, #tpu.memory_space<vmem>>, vector<1x4x256xf32>
    %92 = vector.shape_cast %91 : vector<1x4x256xf32> to vector<4x256xf32>
    %93 = vector.shape_cast %90 : vector<4x256xf32> to vector<1x4x256xf32>
    tpu.vector_store %arg11[%c0_24, %c0_25, %c0_26], %93 {strides = array<i32>} : memref<1x4x256xf32, #tpu.memory_space<vmem>>, vector<1x4x256xf32>,
    return
  }
  func.func @transform_0(%arg0: i32, %arg1: i32) -> (i32, i32, i32) {
    %c0_i32 = arith.constant 0 : i32
    %c0_i32_0 = arith.constant 0 : i32
    return %arg0, %c0_i32, %arg1 : i32, i32, i32
  }
  func.func @transform_1(%arg0: i32, %arg1: i32) -> (i32, i32) {
    %c0_i32 = arith.constant 0 : i32
    %c0_i32_0 = arith.constant 0 : i32
    %c0_i32_1 = arith.constant 0 : i32
    return %c0_i32, %c0_i32_0 : i32, i32
  }
  func.func @transform_2(%arg0: i32, %arg1: i32) -> (i32, i32) {
    %c0_i32 = arith.constant 0 : i32
    %c0_i32_0 = arith.constant 0 : i32
    %c0_i32_1 = arith.constant 0 : i32
    return %c0_i32, %c0_i32_0 : i32, i32
  }
  func.func @transform_3(%arg0: i32, %arg1: i32) -> (i32, i32, i32) {
    %c0_i32 = arith.constant 0 : i32
    %c0_i32_0 = arith.constant 0 : i32
    %c0_i32_1 = arith.constant 0 : i32
    %c0_i32_2 = arith.constant 0 : i32
    return %c0_i32, %c0_i32_0, %c0_i32_1 : i32, i32, i32
  }
  func.func @transform_4(%arg0: i32, %arg1: i32) -> (i32, i32, i32) {
    %c0_i32 = arith.constant 0 : i32
    %c0_i32_0 = arith.constant 0 : i32
    %c0_i32_1 = arith.constant 0 : i32
    %c0_i32_2 = arith.constant 0 : i32
    return %c0_i32, %c0_i32_0, %c0_i32_1 : i32, i32, i32
  }
  func.func @transform_5(%arg0: i32, %arg1: i32) -> (i32, i32) {
    %c0_i32 = arith.constant 0 : i32
    %c0_i32_0 = arith.constant 0 : i32
    %c0_i32_1 = arith.constant 0 : i32
    return %c0_i32, %c0_i32_0 : i32, i32
  }
  func.func @transform_6(%arg0: i32, %arg1: i32) -> (i32, i32) {
    %c0_i32 = arith.constant 0 : i32
    %c0_i32_0 = arith.constant 0 : i32
    %c0_i32_1 = arith.constant 0 : i32
    return %c0_i32, %c0_i32_0 : i32, i32
  }
  func.func @transform_7(%arg0: i32, %arg1: i32) -> (i32, i32) {
    %c0_i32 = arith.constant 0 : i32
    %c0_i32_0 = arith.constant 0 : i32
    %c0_i32_1 = arith.constant 0 : i32
    return %c0_i32, %c0_i32_0 : i32, i32
  }
  func.func @transform_8(%arg0: i32, %arg1: i32) -> (i32, i32) {
    %c0_i32 = arith.constant 0 : i32
    %c0_i32_0 = arith.constant 0 : i32
    %c0_i32_1 = arith.constant 0 : i32
    return %c0_i32, %c0_i32_0 : i32, i32
  }
  func.func @transform_9(%arg0: i32, %arg1: i32) -> (i32, i32, i32) {
    %c0_i32 = arith.constant 0 : i32
    %c0_i32_0 = arith.constant 0 : i32
    return %arg0, %c0_i32, %arg1 : i32, i32, i32
  }
}

</mosaic_0001>

<llo_original>
// kernel: noisy_net_conv.2
$region0: #{noisy_net_conv.2}
  #allocation0 [shape = 'u32[]', space=smem, size = 0x4, offset = 0x4, fixed_abs, tag = 'smem constant byte address 0x4 - core index']
  #allocation1 [shape = 'u32[72,128]{1,0:T(1,128)}', space=vmem, size = 0x9000, scoped, tag = 'internal scratch']
  %s0 = inlined_call_operand.vmem [shape: f32[2,4,256], index: 0, kind: input, shape index: {}]
  %s1 = inlined_call_operand.vmem [shape: f32[4,4], index: 1, kind: input, shape index: {}]
  %s2 = inlined_call_operand.vmem [shape: f32[4,1], index: 2, kind: input, shape index: {}]
  %s3 = inlined_call_operand.vmem [shape: f32[2,4,1], index: 3, kind: output, shape index: {0}]
  %s4 = inlined_call_operand.vmem [shape: f32[2,4,1], index: 4, kind: output, shape index: {1}]
  %5 = xla_tuple %s3, %s4
  %s6 = sld [smem:[#allocation0]]
  $region57: #{noisy_net_conv.2} parent=0
    _
  %s8 = ssub.s32 1, %s6
  %s9 = scalar_select 0, %s8, %s6
  loop: start=0, step=1, limit=4
  $region2: #{noisy_net_conv.2} parent=0 // loop_pre_header
    _
  $region3: #{noisy_net_conv.2} parent=0 // loop_header
    %s11 = sphi 0, %s15
    %p12 = scmp.ge.s32.totalorder %s11, 4
    %s18 = sphi 0, %s30
    %s19 = sphi 0, %s26
    %s20 = sphi 0, %s18
    %s21 = sphi 0, %s19
    %s22 = sphi 0, %s20
    %s23 = sphi 0, %s21
    %s35 = sphi 0, %s37
    %s38 = sphi 0, %s35
    %s39 = sphi 0, %s38
    %s55 = sphi 0, %s39
    %s59 = sphi 0, %s59
    %s61 = sphi 0, %s59
    %s62 = sphi 0, %s61
    %s76 = sphi 0, %s62
    %s80 = sphi 0, %s80
    %s82 = sphi 0, %s80
    %s83 = sphi 0, %s82
    %s97 = sphi 0, %s83
    %s103 = sphi 0, %s105
    %s106 = sphi 0, %s103
    %s107 = sphi 0, %s106
    %s123 = sphi 0, %s107
    %s129 = sphi 0, %s131
    %s132 = sphi 0, %s129
    %s133 = sphi 0, %s132
    %s149 = sphi 0, %s133
  $region4: #{noisy_net_conv.2} parent=0 // loop_header_branch
    %14 = sbr.rel (%p12) target = $region8
  $region5: #{noisy_net_conv.2} parent=0 // loop_body
    %s16 = ssub.s32 %s11, 1
    %s17 = ssub.s32 %s11, 2
    %s24 = sadd.s32 1, %s19
    %p25 = scmp.ge.s32.totalorder %s24, 1
    %s26 = scalar_select %p25, 0, %s24
    %s27 = sadd.s32 1, %s18
    %s28 = scalar_select %p25, %s27, %s18
    %p29 = scmp.ge.s32.totalorder %s28, 2
    %s30 = scalar_select %p29, 0, %s28
    %s31 = ssub.s32 %s18, %s30
    %s32 = ssub.s32 %s19, %s26
    %s33 = sor.u32 %s31, %s32
    %p34 = scmp.eq.s32.totalorder %s33, 0
    %s36 = sadd.s32 %s35, 1
    %s37 = scalar_select %p34, %s35, %s36
    %p40 = pneg %p34
    %p41 = scmp.eq.s32.totalorder %s11, 1
    %p42 = por %p40, %p41
    %p43 = scmp.ne.s32.totalorder %s35, %s38
    %p44 = scmp.eq.s32.totalorder %s11, 0
    %p45 = por %p43, %p44
    %p46 = scmp.ne.s32.totalorder %s35, %s38
    %p47 = scmp.eq.s32.totalorder %s16, 1
    %p48 = por %p46, %p47
    %p49 = scmp.ne.s32.totalorder %s38, %s39
    %p50 = scmp.eq.s32.totalorder %s16, 0
    %p51 = por %p49, %p50
    %p52 = scmp.ne.s32.totalorder %s38, %s39
    %p53 = scmp.eq.s32.totalorder %s17, 1
    %p54 = por %p52, %p53
    %p56 = scmp.ne.s32.totalorder %s39, %s55
    %p57 = scmp.eq.s32.totalorder %s17, 0
    %p58 = por %p56, %p57
    %s60 = sadd.s32 %s59, 1
    %p63 = scmp.eq.s32.totalorder %s11, 1
    %p64 = scmp.ne.s32.totalorder %s59, %s61
    %p65 = scmp.eq.s32.totalorder %s11, 0
    %p66 = por %p64, %p65
    %p67 = scmp.ne.s32.totalorder %s59, %s61
    %p68 = scmp.eq.s32.totalorder %s16, 1
    %p69 = por %p67, %p68
    %p70 = scmp.ne.s32.totalorder %s61, %s62
    %p71 = scmp.eq.s32.totalorder %s16, 0
    %p72 = por %p70, %p71
    %p73 = scmp.ne.s32.totalorder %s61, %s62
    %p74 = scmp.eq.s32.totalorder %s17, 1
    %p75 = por %p73, %p74
    %p77 = scmp.ne.s32.totalorder %s62, %s76
    %p78 = scmp.eq.s32.totalorder %s17, 0
    %p79 = por %p77, %p78
    %s81 = sadd.s32 %s80, 1
    %p84 = scmp.eq.s32.totalorder %s11, 1
    %p85 = scmp.ne.s32.totalorder %s80, %s82
    %p86 = scmp.eq.s32.totalorder %s11, 0
    %p87 = por %p85, %p86
    %p88 = scmp.ne.s32.totalorder %s80, %s82
    %p89 = scmp.eq.s32.totalorder %s16, 1
    %p90 = por %p88, %p89
    %p91 = scmp.ne.s32.totalorder %s82, %s83
    %p92 = scmp.eq.s32.totalorder %s16, 0
    %p93 = por %p91, %p92
    %p94 = scmp.ne.s32.totalorder %s82, %s83
    %p95 = scmp.eq.s32.totalorder %s17, 1
    %p96 = por %p94, %p95
    %p98 = scmp.ne.s32.totalorder %s83, %s97
    %p99 = scmp.eq.s32.totalorder %s17, 0
    %p100 = por %p98, %p99
    %s101 = ssub.s32 %s18, %s30
    %p102 = scmp.eq.s32.totalorder %s101, 0
    %s104 = sadd.s32 %s103, 1
    %s105 = scalar_select %p102, %s103, %s104
    %p108 = pneg %p102
    %p109 = scmp.eq.s32.totalorder %s11, 1
    %p110 = por %p108, %p109
    %p111 = scmp.ne.s32.totalorder %s103, %s106
    %p112 = scmp.eq.s32.totalorder %s11, 0
    %p113 = por %p111, %p112
    %p114 = scmp.ne.s32.totalorder %s103, %s106
    %p115 = scmp.eq.s32.totalorder %s16, 1
    %p116 = por %p114, %p115
    %p117 = scmp.ne.s32.totalorder %s106, %s107
    %p118 = scmp.eq.s32.totalorder %s16, 0
    %p119 = por %p117, %p118
    %p120 = scmp.ne.s32.totalorder %s106, %s107
    %p121 = scmp.eq.s32.totalorder %s17, 1
    %p122 = por %p120, %p121
    %p124 = scmp.ne.s32.totalorder %s107, %s123
    %p125 = scmp.eq.s32.totalorder %s17, 0
    %p126 = por %p124, %p125
    %s127 = ssub.s32 %s18, %s30
    %p128 = scmp.eq.s32.totalorder %s127, 0
    %s130 = sadd.s32 %s129, 1
    %s131 = scalar_select %p128, %s129, %s130
    %p134 = pneg %p128
    %p135 = scmp.eq.s32.totalorder %s11, 1
    %p136 = por %p134, %p135
    %p137 = scmp.ne.s32.totalorder %s129, %s132
    %p138 = scmp.eq.s32.totalorder %s11, 0
    %p139 = por %p137, %p138
    %p140 = scmp.ne.s32.totalorder %s129, %s132
    %p141 = scmp.eq.s32.totalorder %s16, 1
    %p142 = por %p140, %p141
    %p143 = scmp.ne.s32.totalorder %s132, %s133
    %p144 = scmp.eq.s32.totalorder %s16, 0
    %p145 = por %p143, %p144
    %p146 = scmp.ne.s32.totalorder %s132, %s133
    %p147 = scmp.eq.s32.totalorder %s17, 1
    %p148 = por %p146, %p147
    %p150 = scmp.ne.s32.totalorder %s133, %s149
    %p151 = scmp.eq.s32.totalorder %s17, 0
    %p152 = por %p150, %p151
    %p153 = scmp.le.s32.totalorder 1, %s11
    %p154 = scmp.lt.s32.totalorder %s11, 3
    %p155 = pnand %p153, %p154
    %p156 = pneg %p155
    // Predicated region
    $region9: #{noisy_net_conv.2} parent=5 // pred_check
      _
    $region10: #{noisy_net_conv.2} parent=5 // pred_check_branch
      %158 = sbr.rel (%p155) target = $region12
    $region11: #{noisy_net_conv.2} parent=5 // pred_region
      %s159 = ssub.s32 %s11, 1
      // Predicated region
      $region13: #{noisy_net_conv.2} parent=11 // pred_check
        %p160 = pneg %p72
      $region14: #{noisy_net_conv.2} parent=11 // pred_check_branch
        %162 = sbr.rel (%p160) target = $region16
      $region15: #{noisy_net_conv.2} parent=11 // pred_region
        _
      $region16: #{noisy_net_conv.2} parent=11 // pred_fallthru
        _
      // Predicated region
      $region17: #{noisy_net_conv.2} parent=11 // pred_check
        %p163 = pneg %p93
      $region18: #{noisy_net_conv.2} parent=11 // pred_check_branch
        %165 = sbr.rel (%p163) target = $region20
      $region19: #{noisy_net_conv.2} parent=11 // pred_region
        _
      $region20: #{noisy_net_conv.2} parent=11 // pred_fallthru
        _
    $region12: #{noisy_net_conv.2} parent=5 // pred_fallthru
      _
    %p166 = scmp.lt.s32.totalorder %s11, 2
    // Predicated region
    $region21: #{noisy_net_conv.2} parent=5 // pred_check
      %p167 = pneg %p166
    $region22: #{noisy_net_conv.2} parent=5 // pred_check_branch
      %169 = sbr.rel (%p167) target = $region24
    $region23: #{noisy_net_conv.2} parent=5 // pred_region
      // Predicated region
      $region25: #{noisy_net_conv.2} parent=23 // pred_check
        %p170 = pneg %p45
      $region26: #{noisy_net_conv.2} parent=23 // pred_check_branch
        %172 = sbr.rel (%p170) target = $region28
      $region27: #{noisy_net_conv.2} parent=23 // pred_region
        %s173 = smul.u32 2, %s19
        %p174 = scmp.lt.s32.totalorder %s18, 1
        %s175 = scalar_select %p174, %s18, 1
        %p176 = scmp.lt.s32.totalorder %s173, 1
        %s177 = scalar_select %p176, %s173, 1
        %s178 = smul.addr %s175, 2
        %s179 = sadd.s32 %s177, %s178
        %s180 = smul.addr %s179, 4
        %s181 = scalar_lea.vmem %s0, %s180
        %s182 = smul.u32 2, %s19
      $region28: #{noisy_net_conv.2} parent=23 // pred_fallthru
        _
    $region24: #{noisy_net_conv.2} parent=5 // pred_fallthru
      _
    %p183 = scmp.le.s32.totalorder 1, %s11
    %p184 = scmp.lt.s32.totalorder %s11, 3
    %p185 = pnand %p183, %p184
    %p186 = pneg %p185
    // Predicated region
    $region29: #{noisy_net_conv.2} parent=5 // pred_check
      _
    $region30: #{noisy_net_conv.2} parent=5 // pred_check_branch
      %188 = sbr.rel (%p185) target = $region32
    $region31: #{noisy_net_conv.2} parent=5 // pred_region
      %s189 = ssub.s32 %s11, 1
      %s190 = smul.u32 2, %s21
      %p191 = scmp.lt.s32.totalorder %s20, 1
      %s192 = scalar_select %p191, %s20, 1
      %p193 = scmp.lt.s32.totalorder %s190, 1
      %s194 = scalar_select %p193, %s190, 1
      %s195 = smul.addr %s192, 2
      %s196 = sadd.s32 %s194, %s195
      %s197 = smul.addr %s196, 4
      %s198 = scalar_lea.vmem %s0, %s197
      %p199 = pneg %p51
      %p200 = pneg %p48
      %p201 = pneg %p72
      %p202 = pneg %p69
      %p203 = pneg %p93
      %p204 = pneg %p90
      %p205 = pneg %p119
      %p206 = pneg %p116
      %p207 = scmp.lt.s32.totalorder %s20, 1
      %s208 = scalar_select %p207, %s20, 1
      %s209 = smul.addr %s208, 4
      %s210 = scalar_lea.vmem %s3, %s209
      %p211 = pneg %p145
      %p212 = pneg %p142
      %p213 = scmp.lt.s32.totalorder %s20, 1
      %s214 = scalar_select %p213, %s20, 1
      %s215 = smul.addr %s214, 4
      %s216 = scalar_lea.vmem %s4, %s215
      %s217 = smul.u32 2, %s21
      %p218 = scmp.lt.s32.totalorder %s20, 1
      %s219 = scalar_select %p218, %s20, 1
      %p220 = scmp.lt.s32.totalorder %s217, 1
      %s221 = scalar_select %p220, %s217, 1
      %s222 = smul.addr %s219, 2
      %s223 = sadd.s32 %s221, %s222
      %s224 = smul.addr %s223, 4
      %s225 = scalar_lea.vmem %s0, %s224
      %s226 = smul.u32 2, %s21
      %p227 = scmp.lt.s32.totalorder %s20, 1
      %s228 = scalar_select %p227, %s20, 1
      %s229 = smul.addr %s228, 4
      %s230 = scalar_lea.vmem %s3, %s229
      %p231 = scmp.lt.s32.totalorder %s20, 1
      %s232 = scalar_select %p231, %s20, 1
      %s233 = smul.addr %s232, 4
      %s234 = scalar_lea.vmem %s4, %s233
      %p235 = scmp.eq.s32.totalorder %s21, 0
      // Predicated region
      $region33: #{noisy_net_conv.2} parent=31 // pred_check
        %p236 = pneg %p235
      $region34: #{noisy_net_conv.2} parent=31 // pred_check_branch
        %238 = sbr.rel (%p236) target = $region36
      $region35: #{noisy_net_conv.2} parent=31 // pred_region
        %vm239 = vcmask 3072
        %240 = vst.msk [vmem:[%s230] sm:$0xf] %vm239, 0.0
        %241 = vst.msk [vmem:[%s234] sm:$0xf] %vm239, 0.0
      $region36: #{noisy_net_conv.2} parent=31 // pred_fallthru
        _
      %v242 = vld [vmem:[%s1] sm:$0xf]
      %v243 = vld [vmem:[%s225] sm:$0xff]
      %v244 = vld [vmem:[%s2] sm:$0xf]
      %246 = vset.pattern.permute.xlu0 0
      %247 = vperm.xlu0 %246, %v242
      %v248 = vpop.permute.xlu0 %247
      %v251 = vperm.slane %v243, 0
      %v252 = vperm.slane %v243, 4
      %v255 = vperm.slane %v251, 0
      %v256 = vperm.slane %v252, 0
      %v257 = vmul.f32 %v248, %v255
      %v258 = vmul.f32 %v248, %v256
      %260 = vset.pattern.permute.xlu0 0
      %261 = vperm.xlu0 %260, %v244
      %v262 = vpop.permute.xlu0 %261
      %v264 = vadd.f32 %v262, %v257
      %v265 = vadd.f32 %v262, %v258
      %266 = vset.pattern.permute.xlu0 1
      %267 = vperm.xlu0 %266, %v242
      %v268 = vpop.permute.xlu0 %267
      %v270 = vperm.slane %v243, 1
      %v271 = vperm.slane %v243, 5
      %v274 = vperm.slane %v270, 1
      %v275 = vperm.slane %v271, 1
      %v276 = vmul.f32 %v268, %v274
      %v277 = vmul.f32 %v268, %v275
      %v278 = vadd.f32 %v264, %v276
      %v279 = vadd.f32 %v265, %v277
      %280 = vset.pattern.permute.xlu0 2
      %281 = vperm.xlu0 %280, %v242
      %v282 = vpop.permute.xlu0 %281
      %v284 = vperm.slane %v243, 2
      %v285 = vperm.slane %v243, 6
      %v288 = vperm.slane %v284, 2
      %v289 = vperm.slane %v285, 2
      %v290 = vmul.f32 %v282, %v288
      %v291 = vmul.f32 %v282, %v289
      %v292 = vadd.f32 %v278, %v290
      %v293 = vadd.f32 %v279, %v291
      %294 = vset.pattern.permute.xlu0 3
      %295 = vperm.xlu0 %294, %v242
      %v296 = vpop.permute.xlu0 %295
      %v298 = vperm.slane %v243, 3
      %v299 = vperm.slane %v243, 7
      %v302 = vperm.slane %v298, 3
      %v303 = vperm.slane %v299, 3
      %v304 = vmul.f32 %v296, %v302
      %v305 = vmul.f32 %v296, %v303
      %v306 = vadd.f32 %v292, %v304
      %v307 = vadd.f32 %v293, %v305
      %v308 = vld [vmem:[%s230] sm:$0xf]
      %vm309 = vcmask 1043456
      %v310 = vsel %vm309, %v306, 0.0
      %v311 = vsel %vm309, %v307, 0.0
      %v312 = vadd.f32 %v310, %v311
      %313 = vadd.xlane.f32.xlu0 %v312
      %v314 = vpop.xlane.xlu0 %313
      %v315 = vadd.f32 %v308, %v314
      %vm316 = vcmask 3072
      %317 = vst.msk [vmem:[%s230] sm:$0xf] %vm316, %v315
      %v318 = vld [vmem:[%s234] sm:$0xf]
      %v319 = vmul.f32 %v306, %v306
      %v320 = vmul.f32 %v307, %v307
      %v321 = vsel %vm309, %v319, 0.0
      %v322 = vsel %vm309, %v320, 0.0
      %v323 = vadd.f32 %v321, %v322
      %324 = vadd.xlane.f32.xlu0 %v323
      %v325 = vpop.xlane.xlu0 %324
      %v326 = vadd.f32 %v318, %v325
      %327 = vst.msk [vmem:[%s234] sm:$0xf] %vm316, %v326
      %p328 = scmp.lt.s32.totalorder %s20, 1
      %s329 = scalar_select %p328, %s20, 1
      %s330 = smul.addr %s329, 4
      %s331 = scalar_lea.vmem %s3, %s330
      %p332 = scmp.lt.s32.totalorder %s20, 1
      %s333 = scalar_select %p332, %s20, 1
      %s334 = smul.addr %s333, 4
      %s335 = scalar_lea.vmem %s4, %s334
      // Predicated region
      $region37: #{noisy_net_conv.2} parent=31 // pred_check
        %p336 = pneg %p116
      $region38: #{noisy_net_conv.2} parent=31 // pred_check_branch
        %338 = sbr.rel (%p336) target = $region40
      $region39: #{noisy_net_conv.2} parent=31 // pred_region
        _
      $region40: #{noisy_net_conv.2} parent=31 // pred_fallthru
        _
      // Predicated region
      $region41: #{noisy_net_conv.2} parent=31 // pred_check
        %p339 = pneg %p142
      $region42: #{noisy_net_conv.2} parent=31 // pred_check_branch
        %341 = sbr.rel (%p339) target = $region44
      $region43: #{noisy_net_conv.2} parent=31 // pred_region
        _
      $region44: #{noisy_net_conv.2} parent=31 // pred_fallthru
        _
    $region32: #{noisy_net_conv.2} parent=5 // pred_fallthru
      _
    %p342 = scmp.le.s32.totalorder 2, %s11
    // Predicated region
    $region45: #{noisy_net_conv.2} parent=5 // pred_check
      %p343 = pneg %p342
    $region46: #{noisy_net_conv.2} parent=5 // pred_check_branch
      %345 = sbr.rel (%p343) target = $region48
    $region47: #{noisy_net_conv.2} parent=5 // pred_region
      %s346 = ssub.s32 %s11, 2
      // Predicated region
      $region49: #{noisy_net_conv.2} parent=47 // pred_check
        %p347 = pneg %p122
      $region50: #{noisy_net_conv.2} parent=47 // pred_check_branch
        %349 = sbr.rel (%p347) target = $region52
      $region51: #{noisy_net_conv.2} parent=47 // pred_region
        %p350 = scmp.lt.s32.totalorder %s22, 1
        %s351 = scalar_select %p350, %s22, 1
        %s352 = smul.addr %s351, 4
        %s353 = scalar_lea.vmem %s3, %s352
      $region52: #{noisy_net_conv.2} parent=47 // pred_fallthru
        _
      // Predicated region
      $region53: #{noisy_net_conv.2} parent=47 // pred_check
        %p354 = pneg %p148
      $region54: #{noisy_net_conv.2} parent=47 // pred_check_branch
        %356 = sbr.rel (%p354) target = $region56
      $region55: #{noisy_net_conv.2} parent=47 // pred_region
        %p357 = scmp.lt.s32.totalorder %s22, 1
        %s358 = scalar_select %p357, %s22, 1
        %s359 = smul.addr %s358, 4
        %s360 = scalar_lea.vmem %s4, %s359
      $region56: #{noisy_net_conv.2} parent=47 // pred_fallthru
        _
    $region48: #{noisy_net_conv.2} parent=5 // pred_fallthru
      _
  $region6: #{noisy_net_conv.2} parent=0 // loop_footer
    %s15 = sadd.s32 1, %s11
  $region7: #{noisy_net_conv.2} parent=0 // loop_footer_branch
    %10 = sbr.rel target = $region3
  $region8: #{noisy_net_conv.2} parent=0 // loop_exit
    _

// kernel: noisy_net_conv.3
$region0: #{noisy_net_conv.3}
  #allocation0 [shape = 'u32[]', space=smem, size = 0x4, offset = 0x4, fixed_abs, tag = 'smem constant byte address 0x4 - core index']
  #allocation1 [shape = 'u32[72,128]{1,0:T(1,128)}', space=vmem, size = 0x9000, scoped, tag = 'internal scratch']
  %s0 = inlined_call_operand.vmem [shape: f32[2,4,256], index: 0, kind: input, shape index: {}]
  %s1 = inlined_call_operand.vmem [shape: f32[4,4], index: 1, kind: input, shape index: {}]
  %s2 = inlined_call_operand.vmem [shape: f32[4,1], index: 2, kind: input, shape index: {}]
  %s3 = inlined_call_operand.vmem [shape: f32[2,4,1], index: 3, kind: input, shape index: {}]
  %s4 = inlined_call_operand.vmem [shape: f32[2,4,1], index: 4, kind: input, shape index: {}]
  %s5 = inlined_call_operand.vmem [shape: f32[4,1], index: 5, kind: input, shape index: {}]
  %s6 = inlined_call_operand.vmem [shape: f32[4,1], index: 6, kind: input, shape index: {}]
  %s7 = inlined_call_operand.vmem [shape: f32[4,4], index: 7, kind: input, shape index: {}]
  %s8 = inlined_call_operand.vmem [shape: f32[4,1], index: 8, kind: input, shape index: {}]
  %s9 = inlined_call_operand.vmem [shape: f32[2,4,256], index: 9, kind: output, shape index: {}]
  %s10 = sld [smem:[#allocation0]]
  $region69: #{noisy_net_conv.3} parent=0
    _
  %s12 = ssub.s32 1, %s10
  %s13 = scalar_select 0, %s12, %s10
  loop: start=0, step=1, limit=4
  $region2: #{noisy_net_conv.3} parent=0 // loop_pre_header
    _
  $region3: #{noisy_net_conv.3} parent=0 // loop_header
    %s15 = sphi 0, %s19
    %p16 = scmp.ge.s32.totalorder %s15, 4
    %s22 = sphi 0, %s34
    %s23 = sphi 0, %s30
    %s24 = sphi 0, %s22
    %s25 = sphi 0, %s23
    %s26 = sphi 0, %s24
    %s27 = sphi 0, %s25
    %s39 = sphi 0, %s41
    %s42 = sphi 0, %s39
    %s43 = sphi 0, %s42
    %s59 = sphi 0, %s43
    %s63 = sphi 0, %s63
    %s65 = sphi 0, %s63
    %s66 = sphi 0, %s65
    %s80 = sphi 0, %s66
    %s84 = sphi 0, %s84
    %s86 = sphi 0, %s84
    %s87 = sphi 0, %s86
    %s101 = sphi 0, %s87
    %s105 = sphi 0, %s105
    %s107 = sphi 0, %s105
    %s108 = sphi 0, %s107
    %s122 = sphi 0, %s108
    %s126 = sphi 0, %s126
    %s128 = sphi 0, %s126
    %s129 = sphi 0, %s128
    %s143 = sphi 0, %s129
    %s147 = sphi 0, %s147
    %s149 = sphi 0, %s147
    %s150 = sphi 0, %s149
    %s164 = sphi 0, %s150
    %s168 = sphi 0, %s168
    %s170 = sphi 0, %s168
    %s171 = sphi 0, %s170
    %s185 = sphi 0, %s171
    %s189 = sphi 0, %s189
    %s191 = sphi 0, %s189
    %s192 = sphi 0, %s191
    %s206 = sphi 0, %s192
    %s210 = sphi 0, %s210
    %s212 = sphi 0, %s210
    %s213 = sphi 0, %s212
    %s227 = sphi 0, %s213
    %s235 = sphi 0, %s237
    %s238 = sphi 0, %s235
    %s239 = sphi 0, %s238
    %s255 = sphi 0, %s239
  $region4: #{noisy_net_conv.3} parent=0 // loop_header_branch
    %18 = sbr.rel (%p16) target = $region8
  $region5: #{noisy_net_conv.3} parent=0 // loop_body
    %s20 = ssub.s32 %s15, 1
    %s21 = ssub.s32 %s15, 2
    %s28 = sadd.s32 1, %s23
    %p29 = scmp.ge.s32.totalorder %s28, 1
    %s30 = scalar_select %p29, 0, %s28
    %s31 = sadd.s32 1, %s22
    %s32 = scalar_select %p29, %s31, %s22
    %p33 = scmp.ge.s32.totalorder %s32, 2
    %s34 = scalar_select %p33, 0, %s32
    %s35 = ssub.s32 %s22, %s34
    %s36 = ssub.s32 %s23, %s30
    %s37 = sor.u32 %s35, %s36
    %p38 = scmp.eq.s32.totalorder %s37, 0
    %s40 = sadd.s32 %s39, 1
    %s41 = scalar_select %p38, %s39, %s40
    %p44 = pneg %p38
    %p45 = scmp.eq.s32.totalorder %s15, 1
    %p46 = por %p44, %p45
    %p47 = scmp.ne.s32.totalorder %s39, %s42
    %p48 = scmp.eq.s32.totalorder %s15, 0
    %p49 = por %p47, %p48
    %p50 = scmp.ne.s32.totalorder %s39, %s42
    %p51 = scmp.eq.s32.totalorder %s20, 1
    %p52 = por %p50, %p51
    %p53 = scmp.ne.s32.totalorder %s42, %s43
    %p54 = scmp.eq.s32.totalorder %s20, 0
    %p55 = por %p53, %p54
    %p56 = scmp.ne.s32.totalorder %s42, %s43
    %p57 = scmp.eq.s32.totalorder %s21, 1
    %p58 = por %p56, %p57
    %p60 = scmp.ne.s32.totalorder %s43, %s59
    %p61 = scmp.eq.s32.totalorder %s21, 0
    %p62 = por %p60, %p61
    %s64 = sadd.s32 %s63, 1
    %p67 = scmp.eq.s32.totalorder %s15, 1
    %p68 = scmp.ne.s32.totalorder %s63, %s65
    %p69 = scmp.eq.s32.totalorder %s15, 0
    %p70 = por %p68, %p69
    %p71 = scmp.ne.s32.totalorder %s63, %s65
    %p72 = scmp.eq.s32.totalorder %s20, 1
    %p73 = por %p71, %p72
    %p74 = scmp.ne.s32.totalorder %s65, %s66
    %p75 = scmp.eq.s32.totalorder %s20, 0
    %p76 = por %p74, %p75
    %p77 = scmp.ne.s32.totalorder %s65, %s66
    %p78 = scmp.eq.s32.totalorder %s21, 1
    %p79 = por %p77, %p78
    %p81 = scmp.ne.s32.totalorder %s66, %s80
    %p82 = scmp.eq.s32.totalorder %s21, 0
    %p83 = por %p81, %p82
    %s85 = sadd.s32 %s84, 1
    %p88 = scmp.eq.s32.totalorder %s15, 1
    %p89 = scmp.ne.s32.totalorder %s84, %s86
    %p90 = scmp.eq.s32.totalorder %s15, 0
    %p91 = por %p89, %p90
    %p92 = scmp.ne.s32.totalorder %s84, %s86
    %p93 = scmp.eq.s32.totalorder %s20, 1
    %p94 = por %p92, %p93
    %p95 = scmp.ne.s32.totalorder %s86, %s87
    %p96 = scmp.eq.s32.totalorder %s20, 0
    %p97 = por %p95, %p96
    %p98 = scmp.ne.s32.totalorder %s86, %s87
    %p99 = scmp.eq.s32.totalorder %s21, 1
    %p100 = por %p98, %p99
    %p102 = scmp.ne.s32.totalorder %s87, %s101
    %p103 = scmp.eq.s32.totalorder %s21, 0
    %p104 = por %p102, %p103
    %s106 = sadd.s32 %s105, 1
    %p109 = scmp.eq.s32.totalorder %s15, 1
    %p110 = scmp.ne.s32.totalorder %s105, %s107
    %p111 = scmp.eq.s32.totalorder %s15, 0
    %p112 = por %p110, %p111
    %p113 = scmp.ne.s32.totalorder %s105, %s107
    %p114 = scmp.eq.s32.totalorder %s20, 1
    %p115 = por %p113, %p114
    %p116 = scmp.ne.s32.totalorder %s107, %s108
    %p117 = scmp.eq.s32.totalorder %s20, 0
    %p118 = por %p116, %p117
    %p119 = scmp.ne.s32.totalorder %s107, %s108
    %p120 = scmp.eq.s32.totalorder %s21, 1
    %p121 = por %p119, %p120
    %p123 = scmp.ne.s32.totalorder %s108, %s122
    %p124 = scmp.eq.s32.totalorder %s21, 0
    %p125 = por %p123, %p124
    %s127 = sadd.s32 %s126, 1
    %p130 = scmp.eq.s32.totalorder %s15, 1
    %p131 = scmp.ne.s32.totalorder %s126, %s128
    %p132 = scmp.eq.s32.totalorder %s15, 0
    %p133 = por %p131, %p132
    %p134 = scmp.ne.s32.totalorder %s126, %s128
    %p135 = scmp.eq.s32.totalorder %s20, 1
    %p136 = por %p134, %p135
    %p137 = scmp.ne.s32.totalorder %s128, %s129
    %p138 = scmp.eq.s32.totalorder %s20, 0
    %p139 = por %p137, %p138
    %p140 = scmp.ne.s32.totalorder %s128, %s129
    %p141 = scmp.eq.s32.totalorder %s21, 1
    %p142 = por %p140, %p141
    %p144 = scmp.ne.s32.totalorder %s129, %s143
    %p145 = scmp.eq.s32.totalorder %s21, 0
    %p146 = por %p144, %p145
    %s148 = sadd.s32 %s147, 1
    %p151 = scmp.eq.s32.totalorder %s15, 1
    %p152 = scmp.ne.s32.totalorder %s147, %s149
    %p153 = scmp.eq.s32.totalorder %s15, 0
    %p154 = por %p152, %p153
    %p155 = scmp.ne.s32.totalorder %s147, %s149
    %p156 = scmp.eq.s32.totalorder %s20, 1
    %p157 = por %p155, %p156
    %p158 = scmp.ne.s32.totalorder %s149, %s150
    %p159 = scmp.eq.s32.totalorder %s20, 0
    %p160 = por %p158, %p159
    %p161 = scmp.ne.s32.totalorder %s149, %s150
    %p162 = scmp.eq.s32.totalorder %s21, 1
    %p163 = por %p161, %p162
    %p165 = scmp.ne.s32.totalorder %s150, %s164
    %p166 = scmp.eq.s32.totalorder %s21, 0
    %p167 = por %p165, %p166
    %s169 = sadd.s32 %s168, 1
    %p172 = scmp.eq.s32.totalorder %s15, 1
    %p173 = scmp.ne.s32.totalorder %s168, %s170
    %p174 = scmp.eq.s32.totalorder %s15, 0
    %p175 = por %p173, %p174
    %p176 = scmp.ne.s32.totalorder %s168, %s170
    %p177 = scmp.eq.s32.totalorder %s20, 1
    %p178 = por %p176, %p177
    %p179 = scmp.ne.s32.totalorder %s170, %s171
    %p180 = scmp.eq.s32.totalorder %s20, 0
    %p181 = por %p179, %p180
    %p182 = scmp.ne.s32.totalorder %s170, %s171
    %p183 = scmp.eq.s32.totalorder %s21, 1
    %p184 = por %p182, %p183
    %p186 = scmp.ne.s32.totalorder %s171, %s185
    %p187 = scmp.eq.s32.totalorder %s21, 0
    %p188 = por %p186, %p187
    %s190 = sadd.s32 %s189, 1
    %p193 = scmp.eq.s32.totalorder %s15, 1
    %p194 = scmp.ne.s32.totalorder %s189, %s191
    %p195 = scmp.eq.s32.totalorder %s15, 0
    %p196 = por %p194, %p195
    %p197 = scmp.ne.s32.totalorder %s189, %s191
    %p198 = scmp.eq.s32.totalorder %s20, 1
    %p199 = por %p197, %p198
    %p200 = scmp.ne.s32.totalorder %s191, %s192
    %p201 = scmp.eq.s32.totalorder %s20, 0
    %p202 = por %p200, %p201
    %p203 = scmp.ne.s32.totalorder %s191, %s192
    %p204 = scmp.eq.s32.totalorder %s21, 1
    %p205 = por %p203, %p204
    %p207 = scmp.ne.s32.totalorder %s192, %s206
    %p208 = scmp.eq.s32.totalorder %s21, 0
    %p209 = por %p207, %p208
    %s211 = sadd.s32 %s210, 1
    %p214 = scmp.eq.s32.totalorder %s15, 1
    %p215 = scmp.ne.s32.totalorder %s210, %s212
    %p216 = scmp.eq.s32.totalorder %s15, 0
    %p217 = por %p215, %p216
    %p218 = scmp.ne.s32.totalorder %s210, %s212
    %p219 = scmp.eq.s32.totalorder %s20, 1
    %p220 = por %p218, %p219
    %p221 = scmp.ne.s32.totalorder %s212, %s213
    %p222 = scmp.eq.s32.totalorder %s20, 0
    %p223 = por %p221, %p222
    %p224 = scmp.ne.s32.totalorder %s212, %s213
    %p225 = scmp.eq.s32.totalorder %s21, 1
    %p226 = por %p224, %p225
    %p228 = scmp.ne.s32.totalorder %s213, %s227
    %p229 = scmp.eq.s32.totalorder %s21, 0
    %p230 = por %p228, %p229
    %s231 = ssub.s32 %s22, %s34
    %s232 = ssub.s32 %s23, %s30
    %s233 = sor.u32 %s231, %s232
    %p234 = scmp.eq.s32.totalorder %s233, 0
    %s236 = sadd.s32 %s235, 1
    %s237 = scalar_select %p234, %s235, %s236
    %p240 = pneg %p234
    %p241 = scmp.eq.s32.totalorder %s15, 1
    %p242 = por %p240, %p241
    %p243 = scmp.ne.s32.totalorder %s235, %s238
    %p244 = scmp.eq.s32.totalorder %s15, 0
    %p245 = por %p243, %p244
    %p246 = scmp.ne.s32.totalorder %s235, %s238
    %p247 = scmp.eq.s32.totalorder %s20, 1
    %p248 = por %p246, %p247
    %p249 = scmp.ne.s32.totalorder %s238, %s239
    %p250 = scmp.eq.s32.totalorder %s20, 0
    %p251 = por %p249, %p250
    %p252 = scmp.ne.s32.totalorder %s238, %s239
    %p253 = scmp.eq.s32.totalorder %s21, 1
    %p254 = por %p252, %p253
    %p256 = scmp.ne.s32.totalorder %s239, %s255
    %p257 = scmp.eq.s32.totalorder %s21, 0
    %p258 = por %p256, %p257
    %p259 = scmp.le.s32.totalorder 1, %s15
    %p260 = scmp.lt.s32.totalorder %s15, 3
    %p261 = pnand %p259, %p260
    %p262 = pneg %p261
    // Predicated region
    $region9: #{noisy_net_conv.3} parent=5 // pred_check
      _
    $region10: #{noisy_net_conv.3} parent=5 // pred_check_branch
      %264 = sbr.rel (%p261) target = $region12
    $region11: #{noisy_net_conv.3} parent=5 // pred_region
      %s265 = ssub.s32 %s15, 1
      // Predicated region
      $region13: #{noisy_net_conv.3} parent=11 // pred_check
        %p266 = pneg %p76
      $region14: #{noisy_net_conv.3} parent=11 // pred_check_branch
        %268 = sbr.rel (%p266) target = $region16
      $region15: #{noisy_net_conv.3} parent=11 // pred_region
        _
      $region16: #{noisy_net_conv.3} parent=11 // pred_fallthru
        _
      // Predicated region
      $region17: #{noisy_net_conv.3} parent=11 // pred_check
        %p269 = pneg %p97
      $region18: #{noisy_net_conv.3} parent=11 // pred_check_branch
        %271 = sbr.rel (%p269) target = $region20
      $region19: #{noisy_net_conv.3} parent=11 // pred_region
        _
      $region20: #{noisy_net_conv.3} parent=11 // pred_fallthru
        _
      // Predicated region
      $region21: #{noisy_net_conv.3} parent=11 // pred_check
        %p272 = pneg %p118
      $region22: #{noisy_net_conv.3} parent=11 // pred_check_branch
        %274 = sbr.rel (%p272) target = $region24
      $region23: #{noisy_net_conv.3} parent=11 // pred_region
        _
      $region24: #{noisy_net_conv.3} parent=11 // pred_fallthru
        _
      // Predicated region
      $region25: #{noisy_net_conv.3} parent=11 // pred_check
        %p275 = pneg %p139
      $region26: #{noisy_net_conv.3} parent=11 // pred_check_branch
        %277 = sbr.rel (%p275) target = $region28
      $region27: #{noisy_net_conv.3} parent=11 // pred_region
        _
      $region28: #{noisy_net_conv.3} parent=11 // pred_fallthru
        _
      // Predicated region
      $region29: #{noisy_net_conv.3} parent=11 // pred_check
        %p278 = pneg %p160
      $region30: #{noisy_net_conv.3} parent=11 // pred_check_branch
        %280 = sbr.rel (%p278) target = $region32
      $region31: #{noisy_net_conv.3} parent=11 // pred_region
        _
      $region32: #{noisy_net_conv.3} parent=11 // pred_fallthru
        _
      // Predicated region
      $region33: #{noisy_net_conv.3} parent=11 // pred_check
        %p281 = pneg %p181
      $region34: #{noisy_net_conv.3} parent=11 // pred_check_branch
        %283 = sbr.rel (%p281) target = $region36
      $region35: #{noisy_net_conv.3} parent=11 // pred_region
        _
      $region36: #{noisy_net_conv.3} parent=11 // pred_fallthru
        _
      // Predicated region
      $region37: #{noisy_net_conv.3} parent=11 // pred_check
        %p284 = pneg %p202
      $region38: #{noisy_net_conv.3} parent=11 // pred_check_branch
        %286 = sbr.rel (%p284) target = $region40
      $region39: #{noisy_net_conv.3} parent=11 // pred_region
        _
      $region40: #{noisy_net_conv.3} parent=11 // pred_fallthru
        _
      // Predicated region
      $region41: #{noisy_net_conv.3} parent=11 // pred_check
        %p287 = pneg %p223
      $region42: #{noisy_net_conv.3} parent=11 // pred_check_branch
        %289 = sbr.rel (%p287) target = $region44
      $region43: #{noisy_net_conv.3} parent=11 // pred_region
        _
      $region44: #{noisy_net_conv.3} parent=11 // pred_fallthru
        _
    $region12: #{noisy_net_conv.3} parent=5 // pred_fallthru
      _
    %p290 = scmp.lt.s32.totalorder %s15, 2
    // Predicated region
    $region45: #{noisy_net_conv.3} parent=5 // pred_check
      %p291 = pneg %p290
    $region46: #{noisy_net_conv.3} parent=5 // pred_check_branch
      %293 = sbr.rel (%p291) target = $region48
    $region47: #{noisy_net_conv.3} parent=5 // pred_region
      // Predicated region
      $region49: #{noisy_net_conv.3} parent=47 // pred_check
        %p294 = pneg %p49
      $region50: #{noisy_net_conv.3} parent=47 // pred_check_branch
        %296 = sbr.rel (%p294) target = $region52
      $region51: #{noisy_net_conv.3} parent=47 // pred_region
        %s297 = smul.u32 2, %s23
        %p298 = scmp.lt.s32.totalorder %s22, 1
        %s299 = scalar_select %p298, %s22, 1
        %p300 = scmp.lt.s32.totalorder %s297, 1
        %s301 = scalar_select %p300, %s297, 1
        %s302 = smul.addr %s299, 2
        %s303 = sadd.s32 %s301, %s302
        %s304 = smul.addr %s303, 4
        %s305 = scalar_lea.vmem %s0, %s304
        %s306 = smul.u32 2, %s23
      $region52: #{noisy_net_conv.3} parent=47 // pred_fallthru
        _
    $region48: #{noisy_net_conv.3} parent=5 // pred_fallthru
      _
    %p307 = scmp.le.s32.totalorder 1, %s15
    %p308 = scmp.lt.s32.totalorder %s15, 3
    %p309 = pnand %p307, %p308
    %p310 = pneg %p309
    // Predicated region
    $region53: #{noisy_net_conv.3} parent=5 // pred_check
      _
    $region54: #{noisy_net_conv.3} parent=5 // pred_check_branch
      %312 = sbr.rel (%p309) target = $region56
    $region55: #{noisy_net_conv.3} parent=5 // pred_region
      %s313 = ssub.s32 %s15, 1
      %s314 = smul.u32 2, %s25
      %p315 = scmp.lt.s32.totalorder %s24, 1
      %s316 = scalar_select %p315, %s24, 1
      %p317 = scmp.lt.s32.totalorder %s314, 1
      %s318 = scalar_select %p317, %s314, 1
      %s319 = smul.addr %s316, 2
      %s320 = sadd.s32 %s318, %s319
      %s321 = smul.addr %s320, 4
      %s322 = scalar_lea.vmem %s0, %s321
      %p323 = pneg %p55
      %p324 = pneg %p52
      %p325 = pneg %p76
      %p326 = pneg %p73
      %p327 = pneg %p97
      %p328 = pneg %p94
      %p329 = pneg %p118
      %p330 = pneg %p115
      %p331 = pneg %p139
      %p332 = pneg %p136
      %p333 = pneg %p160
      %p334 = pneg %p157
      %p335 = pneg %p181
      %p336 = pneg %p178
      %p337 = pneg %p202
      %p338 = pneg %p199
      %p339 = pneg %p223
      %p340 = pneg %p220
      %p341 = pneg %p251
      %p342 = pneg %p248
      %s343 = smul.u32 2, %s25
      %p344 = scmp.lt.s32.totalorder %s24, 1
      %s345 = scalar_select %p344, %s24, 1
      %p346 = scmp.lt.s32.totalorder %s343, 1
      %s347 = scalar_select %p346, %s343, 1
      %s348 = smul.addr %s345, 2
      %s349 = sadd.s32 %s347, %s348
      %s350 = smul.addr %s349, 4
      %s351 = scalar_lea.vmem %s9, %s350
      %s352 = smul.u32 2, %s25
      %p353 = scmp.lt.s32.totalorder %s24, 1
      %s354 = scalar_select %p353, %s24, 1
      %p355 = scmp.lt.s32.totalorder %s352, 1
      %s356 = scalar_select %p355, %s352, 1
      %s357 = smul.addr %s354, 2
      %s358 = sadd.s32 %s356, %s357
      %s359 = smul.addr %s358, 4
      %s360 = scalar_lea.vmem %s0, %s359
      %s361 = smul.u32 2, %s25
      %s362 = smul.u32 2, %s25
      %p363 = scmp.lt.s32.totalorder %s24, 1
      %s364 = scalar_select %p363, %s24, 1
      %p365 = scmp.lt.s32.totalorder %s362, 1
      %s366 = scalar_select %p365, %s362, 1
      %s367 = smul.addr %s364, 2
      %s368 = sadd.s32 %s366, %s367
      %s369 = smul.addr %s368, 4
      %s370 = scalar_lea.vmem %s9, %s369
      %s371 = smul.u32 2, %s25
      %v372 = vld [vmem:[%s3] sm:$0xf]
      %v373 = vld [vmem:[%s3 + $0x4] sm:$0xf]
      %v374 = vadd.f32 %v372, %v373
      %v375 = vmul.f32 %v374, 0.001953125
      %v376 = vld [vmem:[%s4] sm:$0xf]
      %v377 = vld [vmem:[%s4 + $0x4] sm:$0xf]
      %v378 = vadd.f32 %v376, %v377
      %v379 = vmul.f32 %v378, 0.001953125
      %v380 = vmul.f32 %v375, %v375
      %v381 = vsub.f32 %v379, %v380
      %v382 = vmax.f32 %v381, 0.0
      %v383 = vld [vmem:[%s5] sm:$0xf]
      %v384 = vadd.f32 %v382, 1e-05
      %v385 = vrsqrt.pop %v384
      %v386 = vmul.f32 %v385, %v384
      %v387 = vmul.f32 %v386, %v385
      %v388 = vmul.f32 0.5, %v387
      %v389 = vsub.f32 1.5, %v388
      %v390 = vmul.f32 %v385, %v389
      %vm391 = vweird.f32 %v384
      %vm392 = vweird.f32 %v385
      %vm393 = vmor %vm391, %vm392
      %v394 = vsel %vm393, %v385, %v390
      %v395 = vmul.f32 %v383, %v394
      %v396 = vld [vmem:[%s6] sm:$0xf]
      %v397 = vmul.f32 %v375, %v395
      %v398 = vsub.f32 %v396, %v397
      %v399 = vld [vmem:[%s1] sm:$0xf]
      %401 = vset.pattern.permute.xlu0 0
      %402 = vperm.xlu0 %401, %v395
      %v403 = vpop.permute.xlu0 %402
      %v405 = vmul.f32 %v399, %v403
      %v406 = vld [vmem:[%s2] sm:$0xf]
      %v407 = vmul.f32 %v406, %v395
      %v408 = vadd.f32 %v407, %v398
      %v409 = vld [vmem:[%s360] sm:$0xff]
      %411 = vset.pattern.permute.xlu0 0
      %412 = vperm.xlu0 %411, %v405
      %v413 = vpop.permute.xlu0 %412
      %v416 = vperm.slane %v409, 0
      %v417 = vperm.slane %v409, 4
      %v420 = vperm.slane %v416, 0
      %v421 = vperm.slane %v417, 0
      %v422 = vmul.f32 %v413, %v420
      %v423 = vmul.f32 %v413, %v421
      %425 = vset.pattern.permute.xlu0 0
      %426 = vperm.xlu0 %425, %v408
      %v427 = vpop.permute.xlu0 %426
      %v429 = vadd.f32 %v427, %v422
      %v430 = vadd.f32 %v427, %v423
      %431 = vset.pattern.permute.xlu0 1
      %432 = vperm.xlu0 %431, %v405
      %v433 = vpop.permute.xlu0 %432
      %v435 = vperm.slane %v409, 1
      %v436 = vperm.slane %v409, 5
      %v439 = vperm.slane %v435, 1
      %v440 = vperm.slane %v436, 1
      %v441 = vmul.f32 %v433, %v439
      %v442 = vmul.f32 %v433, %v440
      %v443 = vadd.f32 %v429, %v441
      %v444 = vadd.f32 %v430, %v442
      %445 = vset.pattern.permute.xlu0 2
      %446 = vperm.xlu0 %445, %v405
      %v447 = vpop.permute.xlu0 %446
      %v449 = vperm.slane %v409, 2
      %v450 = vperm.slane %v409, 6
      %v453 = vperm.slane %v449, 2
      %v454 = vperm.slane %v450, 2
      %v455 = vmul.f32 %v447, %v453
      %v456 = vmul.f32 %v447, %v454
      %v457 = vadd.f32 %v443, %v455
      %v458 = vadd.f32 %v444, %v456
      %459 = vset.pattern.permute.xlu0 3
      %460 = vperm.xlu0 %459, %v405
      %v461 = vpop.permute.xlu0 %460
      %v463 = vperm.slane %v409, 3
      %v464 = vperm.slane %v409, 7
      %v467 = vperm.slane %v463, 3
      %v468 = vperm.slane %v464, 3
      %v469 = vmul.f32 %v461, %v467
      %v470 = vmul.f32 %v461, %v468
      %v471 = vadd.f32 %v457, %v469
      %v472 = vadd.f32 %v458, %v470
      %v473 = vmax.f32 %v471, 0.0
      %v474 = vmax.f32 %v472, 0.0
      %v475 = vld [vmem:[%s7] sm:$0xf]
      %v476 = vld [vmem:[%s8] sm:$0xf]
      %478 = vset.pattern.permute.xlu0 0
      %479 = vperm.xlu0 %478, %v475
      %v480 = vpop.permute.xlu0 %479
      %v482 = vperm.slane %v473, 0
      %v483 = vperm.slane %v474, 0
      %v484 = vmul.f32 %v480, %v482
      %v485 = vmul.f32 %v480, %v483
      %487 = vset.pattern.permute.xlu0 0
      %488 = vperm.xlu0 %487, %v476
      %v489 = vpop.permute.xlu0 %488
      %v491 = vadd.f32 %v489, %v484
      %v492 = vadd.f32 %v489, %v485
      %493 = vset.pattern.permute.xlu0 1
      %494 = vperm.xlu0 %493, %v475
      %v495 = vpop.permute.xlu0 %494
      %v497 = vperm.slane %v473, 1
      %v498 = vperm.slane %v474, 1
      %v499 = vmul.f32 %v495, %v497
      %v500 = vmul.f32 %v495, %v498
      %v501 = vadd.f32 %v491, %v499
      %v502 = vadd.f32 %v492, %v500
      %503 = vset.pattern.permute.xlu0 2
      %504 = vperm.xlu0 %503, %v475
      %v505 = vpop.permute.xlu0 %504
      %v507 = vperm.slane %v473, 2
      %v508 = vperm.slane %v474, 2
      %v509 = vmul.f32 %v505, %v507
      %v510 = vmul.f32 %v505, %v508
      %v511 = vadd.f32 %v501, %v509
      %v512 = vadd.f32 %v502, %v510
      %513 = vset.pattern.permute.xlu0 3
      %514 = vperm.xlu0 %513, %v475
      %v515 = vpop.permute.xlu0 %514
      %v517 = vperm.slane %v473, 3
      %v518 = vperm.slane %v474, 3
      %v519 = vmul.f32 %v515, %v517
      %v520 = vmul.f32 %v515, %v518
      %v521 = vadd.f32 %v511, %v519
      %v522 = vadd.f32 %v512, %v520
      %v523 = vtanh.pop %v521
      %v524 = vtanh.pop %v522
      %v527 = vrot.slane %v524, 4
      %vm528 = vcmask 1043456
      %v529 = vsel %vm528, %v523, %v527
      %531 = vst [vmem:[%s370] sm:$0xff] %v529
      %s532 = smul.u32 2, %s25
      %p533 = scmp.lt.s32.totalorder %s24, 1
      %s534 = scalar_select %p533, %s24, 1
      %p535 = scmp.lt.s32.totalorder %s532, 1
      %s536 = scalar_select %p535, %s532, 1
      %s537 = smul.addr %s534, 2
      %s538 = sadd.s32 %s536, %s537
      %s539 = smul.addr %s538, 4
      %s540 = scalar_lea.vmem %s9, %s539
      // Predicated region
      $region57: #{noisy_net_conv.3} parent=55 // pred_check
        %p541 = pneg %p248
      $region58: #{noisy_net_conv.3} parent=55 // pred_check_branch
        %543 = sbr.rel (%p541) target = $region60
      $region59: #{noisy_net_conv.3} parent=55 // pred_region
        %s544 = smul.u32 2, %s25
      $region60: #{noisy_net_conv.3} parent=55 // pred_fallthru
        _
    $region56: #{noisy_net_conv.3} parent=5 // pred_fallthru
      _
    %p545 = scmp.le.s32.totalorder 2, %s15
    // Predicated region
    $region61: #{noisy_net_conv.3} parent=5 // pred_check
      %p546 = pneg %p545
    $region62: #{noisy_net_conv.3} parent=5 // pred_check_branch
      %548 = sbr.rel (%p546) target = $region64
    $region63: #{noisy_net_conv.3} parent=5 // pred_region
      %s549 = ssub.s32 %s15, 2
      // Predicated region
      $region65: #{noisy_net_conv.3} parent=63 // pred_check
        %p550 = pneg %p254
      $region66: #{noisy_net_conv.3} parent=63 // pred_check_branch
        %552 = sbr.rel (%p550) target = $region68
      $region67: #{noisy_net_conv.3} parent=63 // pred_region
        %s553 = smul.u32 2, %s27
        %p554 = scmp.lt.s32.totalorder %s26, 1
        %s555 = scalar_select %p554, %s26, 1
        %p556 = scmp.lt.s32.totalorder %s553, 1
        %s557 = scalar_select %p556, %s553, 1
        %s558 = smul.addr %s555, 2
        %s559 = sadd.s32 %s557, %s558
        %s560 = smul.addr %s559, 4
        %s561 = scalar_lea.vmem %s9, %s560
      $region68: #{noisy_net_conv.3} parent=63 // pred_fallthru
        _
    $region64: #{noisy_net_conv.3} parent=5 // pred_fallthru
      _
  $region6: #{noisy_net_conv.3} parent=0 // loop_footer
    %s19 = sadd.s32 1, %s15
  $region7: #{noisy_net_conv.3} parent=0 // loop_footer_branch
    %14 = sbr.rel target = $region3
  $region8: #{noisy_net_conv.3} parent=0 // loop_exit
    _

</llo_original>
